<compile_context>
chip_gen: v6e
topology: v6e:2x2x1
jax: 0.10.0
libtpu: 0.0.40
codegen_flags: <defaults>
</compile_context>

<pallas_src>
import functools

import jax
import jax.numpy as jnp
import numpy as np
from jax.experimental import pallas as pl
from jax.experimental.pallas import tpu as pltpu


# ---------------------------------------------------------------------------
# Helpers
# ---------------------------------------------------------------------------
def _round_up(v, m):
    return ((v + m - 1) // m) * m


def _pick_tn(n, desired):
    """Largest multiple of 128 that divides n and is <= desired."""
    assert n % 128 == 0, n
    t = max(128, min(desired, n) // 128 * 128)
    while n % t:
        t -= 128
    return t


def _pick_sub(c_out, tn):
    """Lane sub-tile so the f32 running-max accumulator stays <= ~16 vregs."""
    sub = max(128, (16384 // c_out) // 128 * 128)
    sub = min(sub, tn)
    while tn % sub:
        sub -= 128
    return sub


# ---------------------------------------------------------------------------
# Pallas kernel: EdgeConv block.
#   out = LeakyReLU( max_j( W_diff @ (x_j - x_i) ) + W_center @ x_i + shift )
# (exactly equal to the module's conv->BN->LeakyReLU->max since LeakyReLU is
#  monotone and the center/shift terms are neighbor-independent).
# ---------------------------------------------------------------------------
def edge_conv_kernel(d_ref, x_ref, wd_ref, wc_ref, b_ref, o_ref, *, sub):
    # d_ref : (k, C_d, TN) bf16   neighbor differences x_j - x_i  (C_d padded to 16)
    # x_ref : (C_c, TN)    f32    center features x_i             (C_c padded to 8)
    # wd_ref: (C_out, C_d) bf16   BN-scale-folded "difference" half of the 1x1 conv
    # wc_ref: (C_out, C_c) bf16   BN-scale-folded "center" half
    # b_ref : (C_out, 1)   f32    BN shift (beta - mean*scale)
    # o_ref : (C_out, TN)  f32
    k = d_ref.shape[0]
    tn = d_ref.shape[-1]
    wd = wd_ref[...]
    wc = wc_ref[...]
    shift = b_ref[...]

    # Register-block the lane axis: acc is (C_out, sub) f32 per sub-tile, k-loop innermost.
    for s in range(tn // sub):
        sl = slice(s * sub, (s + 1) * sub)
        ctr = jnp.dot(wc, x_ref[:, sl].astype(jnp.bfloat16),
                      preferred_element_type=jnp.float32) + shift
        acc = jnp.dot(wd, d_ref[0, :, sl], preferred_element_type=jnp.float32)
        for j in range(1, k):                          # static unroll over neighbors
            acc = jnp.maximum(acc, jnp.dot(wd, d_ref[j, :, sl],
                                           preferred_element_type=jnp.float32))
        y = acc + ctr
        o_ref[:, sl] = jnp.maximum(y, 0.2 * y).astype(o_ref.dtype)


def edge_conv_bn_lrelu_max(diff, h, w_diff, w_ctr, shift, *, tn=512):
    """diff: (B, k, C_d, N) bf16, h: (B, C_c, N) f32 -> (B, C_out, N) f32."""
    B, k, c_d, N = diff.shape
    c_c = h.shape[1]
    c_out = w_diff.shape[0]
    assert w_diff.shape[1] == c_d and w_ctr.shape[1] == c_c
    tn = _pick_tn(N, tn)
    sub = _pick_sub(c_out, tn)

    kernel = functools.partial(edge_conv_kernel, sub=sub)
    return pl.pallas_call(
        kernel,
        out_shape=jax.ShapeDtypeStruct((B, c_out, N), jnp.float32),
        grid_spec=pltpu.PrefetchScalarGridSpec(
            num_scalar_prefetch=0,
            grid=(B, N // tn),                         # batch x lane-tile grid
            in_specs=[
                pl.BlockSpec((None, k, c_d, tn), lambda b, i: (b, 0, 0, i)),
                pl.BlockSpec((None, c_c, tn), lambda b, i: (b, 0, i)),
                # Replicated small operands (constant index maps).
                pl.BlockSpec((c_out, c_d), lambda b, i: (0, 0)),
                pl.BlockSpec((c_out, c_c), lambda b, i: (0, 0)),
                pl.BlockSpec((c_out, 1), lambda b, i: (0, 0)),
            ],
            out_specs=pl.BlockSpec((None, c_out, tn), lambda b, i: (b, 0, i)),
        ),
        compiler_params=pltpu.CompilerParams(
            dimension_semantics=("parallel", "parallel"),
        ),
    )(diff, h, w_diff, w_ctr, shift)


# ---------------------------------------------------------------------------
# Pallas kernel: plain 1x1 Conv1d + BN shift + LeakyReLU (conv5).
# ---------------------------------------------------------------------------
def conv1d_bn_lrelu_kernel(x_ref, w_ref, b_ref, o_ref, *, sub):
    # x_ref: (C_in, TN) bf16, w_ref: (C_out, C_in) bf16, b_ref: (C_out, 1) f32
    tn = x_ref.shape[-1]
    w = w_ref[...]
    shift = b_ref[...]
    for s in range(tn // sub):
        sl = slice(s * sub, (s + 1) * sub)
        y = jnp.dot(w, x_ref[:, sl], preferred_element_type=jnp.float32) + shift
        o_ref[:, sl] = jnp.maximum(y, 0.2 * y).astype(o_ref.dtype)


def conv1d_bn_lrelu(xin, w, shift, *, tn=1024):
    """xin: (B, C_in, N) bf16 -> (B, C_out, N) f32."""
    B, c_in, N = xin.shape
    c_out = w.shape[0]
    tn = _pick_tn(N, tn)
    sub = _pick_sub(c_out, tn)

    kernel = functools.partial(conv1d_bn_lrelu_kernel, sub=sub)
    return pl.pallas_call(
        kernel,
        out_shape=jax.ShapeDtypeStruct((B, c_out, N), jnp.float32),
        grid_spec=pltpu.PrefetchScalarGridSpec(
            num_scalar_prefetch=0,
            grid=(B, N // tn),
            in_specs=[
                pl.BlockSpec((None, c_in, tn), lambda b, i: (b, 0, i)),
                pl.BlockSpec((c_out, c_in), lambda b, i: (0, 0)),
                pl.BlockSpec((c_out, 1), lambda b, i: (0, 0)),
            ],
            out_specs=pl.BlockSpec((None, c_out, tn), lambda b, i: (b, 0, i)),
        ),
        compiler_params=pltpu.CompilerParams(
            dimension_semantics=("parallel", "parallel"),
        ),
    )(xin, w, shift)


# ---------------------------------------------------------------------------
# Graph construction (plain JAX / XLA): knn + neighbor-difference features.
# ---------------------------------------------------------------------------
def knn_idx(x, k):
    """x: (B, C, N) f32 -> (B, N, k) indices of the k nearest points (self included)."""
    xt = jnp.swapaxes(x, 1, 2)                         # (B, N, C)
    inner = -2.0 * jnp.matmul(xt, x)                   # (B, N, N)
    xx = jnp.sum(x * x, axis=1, keepdims=True)         # (B, 1, N)
    pd = -xx - inner - jnp.swapaxes(xx, 1, 2)          # -||x_i - x_j||^2
    _, idx = jax.lax.top_k(pd, k)
    return idx


def edge_diff_features(x, idx, c_pad=None):
    """x: (B, C, N) f32, idx: (B, N, k) -> (B, k, C[_pad], N) bf16 of (x_j - x_i).

    The gather is emitted directly in (B, k, C, N) order (broadcasting
    take_along_axis along the point axis), so no full-tensor transpose pass is
    materialized; the bf16 cast happens right after the f32 subtract."""
    B, C, N = x.shape
    idx_kn = jnp.swapaxes(idx, 1, 2)                   # (B, k, N) -- tiny int transpose
    nbr = jnp.take_along_axis(x[:, None, :, :],        # (B, 1, C, N)
                              idx_kn[:, :, None, :],   # (B, k, 1, N)
                              axis=-1)                 # -> (B, k, C, N)
    diff = (nbr - x[:, None, :, :]).astype(jnp.bfloat16)
    if c_pad is not None and c_pad > C:
        diff = jnp.pad(diff, ((0, 0), (0, 0), (0, c_pad - C), (0, 0)))
    return diff


# ---------------------------------------------------------------------------
# Full forward pass
# ---------------------------------------------------------------------------
def dgcnn_forward(x, params, *, k=16, tn_conv1=1024, tn_edge=512, tn_conv5=1024):
    """x: (B, 3, N) f32 -> (B, 128, N) f32.

    Returns (out, captures); captures hold the exact Pallas-call inputs/outputs for the
    self-test (captures['edge'][i] = (diff, h_in, w_diff, w_ctr, shift, out))."""
    B, _, N = x.shape
    assert N % 128 == 0, "point count must be a multiple of 128"

    captures = {"edge": [], "conv5": None}
    feats = []
    h = x
    for li, (wd, wc, shift) in enumerate(params[:4]):          # four EdgeConv blocks
        idx = knn_idx(h, k)
        diff = edge_diff_features(h, idx, c_pad=wd.shape[1])   # (B, k, C_d, N) bf16
        c_ctr = wc.shape[1]
        h_in = h if h.shape[1] == c_ctr else jnp.pad(
            h, ((0, 0), (0, c_ctr - h.shape[1]), (0, 0)))      # center path pad (conv1)
        tn = tn_conv1 if li == 0 else tn_edge
        f = edge_conv_bn_lrelu_max(diff, h_in, wd, wc, shift, tn=tn)  # (B, C_out, N) f32
        captures["edge"].append((diff, h_in, wd, wc, shift, f))
        feats.append(f)
        h = f

    cat = jnp.concatenate(feats, axis=1).astype(jnp.bfloat16)  # (B, 320, N) bf16
    w5, b5 = params[4]
    out = conv1d_bn_lrelu(cat, w5, b5, tn=tn_conv5)             # (B, 128, N) f32
    captures["conv5"] = (cat, w5, b5, out)
    return out, captures


# ---------------------------------------------------------------------------
# Plain-jnp references (same bf16-operand / f32-accumulation policy).
# ---------------------------------------------------------------------------
def edge_conv_ref(diff, h, wd, wc, shift):
    y = jnp.einsum("oc,bkcn->bkon", wd, diff, preferred_element_type=jnp.float32)
    ctr = jnp.einsum("oc,bcn->bon", wc, h.astype(jnp.bfloat16),
                     preferred_element_type=jnp.float32)
    z = jnp.max(y, axis=1) + ctr + shift[None]
    return jnp.maximum(z, 0.2 * z)


def conv1d_ref(xin, w, shift):
    y = jnp.einsum("oc,bcn->bon", w, xin, preferred_element_type=jnp.float32) + shift[None]
    return jnp.maximum(y, 0.2 * y)


# ---------------------------------------------------------------------------
# Deterministic synthetic parameters (conv weights + eval-mode BN, folded & split).
# ---------------------------------------------------------------------------
def _bn_fold(key, co, eps=1e-5):
    kg, kb, km, kv = jax.random.split(key, 4)
    gamma = jax.random.uniform(kg, (co,), jnp.float32, 0.5, 1.5)
    beta = jax.random.normal(kb, (co,), jnp.float32) * 0.1
    mean = jax.random.normal(km, (co,), jnp.float32) * 0.1
    var = jax.random.uniform(kv, (co,), jnp.float32, 0.5, 1.5)
    scale = gamma / jnp.sqrt(var + eps)
    shift = (beta - mean * scale).reshape(co, 1)
    return scale, shift


def init_params(key):
    # EdgeConv layers: (C_out, C) with conv weight (C_out, 2C) = [W_diff | W_center].
    edge_specs = [(64, 3), (64, 64), (64, 64), (128, 64)]
    params = []
    for i, (co, ci) in enumerate(edge_specs):
        kw, kbn = jax.random.split(jax.random.fold_in(key, i))
        bound = (6.0 / (co + 2 * ci)) ** 0.5            # xavier_uniform on the full conv
        w = jax.random.uniform(kw, (co, 2 * ci), jnp.float32, -bound, bound)
        scale, shift = _bn_fold(kbn, co)
        wd = w[:, :ci] * scale[:, None]                 # neighbor-difference half
        wc = w[:, ci:] * scale[:, None]                 # center half
        wd = jnp.pad(wd, ((0, 0), (0, _round_up(ci, 16) - ci))).astype(jnp.bfloat16)
        wc = jnp.pad(wc, ((0, 0), (0, _round_up(ci, 8) - ci))).astype(jnp.bfloat16)
        params.append((wd, wc, shift))
    # conv5 (plain Conv1d 320 -> 128)
    co, ci = 128, 320
    kw, kbn = jax.random.split(jax.random.fold_in(key, 4))
    bound = (6.0 / (co + ci)) ** 0.5
    w = jax.random.uniform(kw, (co, ci), jnp.float32, -bound, bound)
    scale, shift = _bn_fold(kbn, co)
    params.append(((w * scale[:, None]).astype(jnp.bfloat16), shift))
    return params


if __name__ == "__main__":
    key = jax.random.PRNGKey(0)
    kx, kp = jax.random.split(key)

    B, C, N, K = 2, 3, 128, 16                          # small shapes; N multiple of 128
    x = jax.random.normal(kx, (B, C, N), jnp.float32)
    params = init_params(kp)

    out, caps = dgcnn_forward(x, params, k=K)
    out = jax.block_until_ready(out)
    assert out.shape == (B, 128, N), out.shape

    # 1) Gather-layout check: the broadcasting take_along_axis gather (emitted directly in
    #    (B, k, C, N) order, no transpose pass) must match a naive basic-indexing gather.
    idx0 = knn_idx(x, K)
    diff_fast = edge_diff_features(x, idx0)             # unpadded (B, k, 3, N) bf16
    xt = jnp.swapaxes(x, 1, 2)
    nbr = xt[jnp.arange(B)[:, None, None], idx0]        # (B, N, k, C)
    diff_naive = jnp.transpose(nbr - xt[:, :, None, :], (0, 2, 3, 1)).astype(jnp.bfloat16)
    np.testing.assert_array_equal(np.asarray(diff_fast.astype(jnp.float32)),
                                  np.asarray(diff_naive.astype(jnp.float32)))

    # 2) Per-kernel checks against jnp references on identical inputs (both use bf16
    #    matmul operands with f32 accumulation; only reduction order differs).
    for diff, h_in, wd, wc, shift, got in caps["edge"]:
        want = edge_conv_ref(diff, h_in, wd, wc, shift)
        np.testing.assert_allclose(np.asarray(got), np.asarray(want),
                                   rtol=5e-3, atol=5e-3)
    cat, w5, b5, got5 = caps["conv5"]
    want5 = conv1d_ref(cat, w5, b5)
    np.testing.assert_allclose(np.asarray(got5), np.asarray(want5),
                               rtol=5e-3, atol=5e-3)

    print("KERNEL_OK")
</pallas_src>

<mosaic_0001>
module attributes {stable_mosaic.version = 11 : i64} {
  func.func @edge_conv_kernel(%arg0: i32, %arg1: i32, %arg2: memref<1x16x16x128xbf16, #tpu.memory_space<vmem>>, %arg3: memref<1x8x128xf32, #tpu.memory_space<vmem>>, %arg4: memref<64x16xbf16, #tpu.memory_space<vmem>>, %arg5: memref<64x8xbf16, #tpu.memory_space<vmem>>, %arg6: memref<64x1xf32, #tpu.memory_space<vmem>>, %arg7: memref<1x64x128xf32, #tpu.memory_space<vmem>>) attributes {dimension_semantics = [#tpu.dimension_semantics<parallel>, #tpu.dimension_semantics<parallel>], iteration_bounds = array<i64: 2, 1>, scalar_prefetch = 0 : i64, scratch_operands = 0 : i64, tpu.core_type = #tpu.core_type<tc>, window_params = [{transform_indices = @transform_0, window_bounds = array<i64: 1, 16, 16, 128>}, {transform_indices = @transform_1, window_bounds = array<i64: 1, 8, 128>}, {pipeline_mode = #tpu.pipeline_mode<synchronous>, transform_indices = @transform_2, window_bounds = array<i64: 64, 16>}, {pipeline_mode = #tpu.pipeline_mode<synchronous>, transform_indices = @transform_3, window_bounds = array<i64: 64, 8>}, {pipeline_mode = #tpu.pipeline_mode<synchronous>, transform_indices = @transform_4, window_bounds = array<i64: 64, 1>}, {transform_indices = @transform_5, window_bounds = array<i64: 1, 64, 128>}]} {
    %c0 = arith.constant 0 : index
    %c0_0 = arith.constant 0 : index
    %0 = vector.load %arg4[%c0, %c0_0] : memref<64x16xbf16, #tpu.memory_space<vmem>>, vector<64x16xbf16>
    %c0_1 = arith.constant 0 : index
    %c0_2 = arith.constant 0 : index
    %1 = vector.load %arg5[%c0_1, %c0_2] : memref<64x8xbf16, #tpu.memory_space<vmem>>, vector<64x8xbf16>
    %c0_3 = arith.constant 0 : index
    %c0_4 = arith.constant 0 : index
    %2 = vector.load %arg6[%c0_3, %c0_4] : memref<64x1xf32, #tpu.memory_space<vmem>>, vector<64x1xf32>
    %c0_5 = arith.constant 0 : index
    %c0_6 = arith.constant 0 : index
    %c0_7 = arith.constant 0 : index
    %3 = vector.load %arg3[%c0_5, %c0_6, %c0_7] : memref<1x8x128xf32, #tpu.memory_space<vmem>>, vector<1x8x128xf32>
    %4 = vector.shape_cast %3 : vector<1x8x128xf32> to vector<8x128xf32>
    %5 = arith.truncf %4 : vector<8x128xf32> to vector<8x128xbf16>
    %cst = arith.constant dense<0.000000e+00> : vector<64x128xf32>
    %6 = tpu.matmul %1, %5, %cst {dimension_numbers = #tpu.dot_dimension_numbers<[1], [0], [0], [1], [0, 0, 1, 1], [], []>} : vector<64x8xbf16>, vector<8x128xbf16>, vector<64x128xf32> -> vector<64x128xf32>
    %7 = vector.broadcast %2 : vector<64x1xf32> to vector<64x128xf32>
    %8 = arith.addf %6, %7 : vector<64x128xf32>
    %c0_8 = arith.constant 0 : index
    %c0_9 = arith.constant 0 : index
    %c0_10 = arith.constant 0 : index
    %c0_11 = arith.constant 0 : index
    %9 = vector.load %arg2[%c0_8, %c0_9, %c0_10, %c0_11] : memref<1x16x16x128xbf16, #tpu.memory_space<vmem>>, vector<1x1x16x128xbf16>
    %10 = vector.shape_cast %9 : vector<1x1x16x128xbf16> to vector<16x128xbf16>
    %cst_12 = arith.constant dense<0.000000e+00> : vector<64x128xf32>
    %11 = tpu.matmul %0, %10, %cst_12 {dimension_numbers = #tpu.dot_dimension_numbers<[1], [0], [0], [1], [0, 0, 1, 1], [], []>} : vector<64x16xbf16>, vector<16x128xbf16>, vector<64x128xf32> -> vector<64x128xf32>
    %c0_13 = arith.constant 0 : index
    %c1 = arith.constant 1 : index
    %c0_14 = arith.constant 0 : index
    %c0_15 = arith.constant 0 : index
    %12 = vector.load %arg2[%c0_13, %c1, %c0_14, %c0_15] : memref<1x16x16x128xbf16, #tpu.memory_space<vmem>>, vector<1x1x16x128xbf16>
    %13 = vector.shape_cast %12 : vector<1x1x16x128xbf16> to vector<16x128xbf16>
    %cst_16 = arith.constant dense<0.000000e+00> : vector<64x128xf32>
    %14 = tpu.matmul %0, %13, %cst_16 {dimension_numbers = #tpu.dot_dimension_numbers<[1], [0], [0], [1], [0, 0, 1, 1], [], []>} : vector<64x16xbf16>, vector<16x128xbf16>, vector<64x128xf32> -> vector<64x128xf32>
    %15 = arith.maximumf %11, %14 : vector<64x128xf32>
    %c0_17 = arith.constant 0 : index
    %c2 = arith.constant 2 : index
    %c0_18 = arith.constant 0 : index
    %c0_19 = arith.constant 0 : index
    %16 = vector.load %arg2[%c0_17, %c2, %c0_18, %c0_19] : memref<1x16x16x128xbf16, #tpu.memory_space<vmem>>, vector<1x1x16x128xbf16>
    %17 = vector.shape_cast %16 : vector<1x1x16x128xbf16> to vector<16x128xbf16>
    %cst_20 = arith.constant dense<0.000000e+00> : vector<64x128xf32>
    %18 = tpu.matmul %0, %17, %cst_20 {dimension_numbers = #tpu.dot_dimension_numbers<[1], [0], [0], [1], [0, 0, 1, 1], [], []>} : vector<64x16xbf16>, vector<16x128xbf16>, vector<64x128xf32> -> vector<64x128xf32>
    %19 = arith.maximumf %15, %18 : vector<64x128xf32>
    %c0_21 = arith.constant 0 : index
    %c3 = arith.constant 3 : index
    %c0_22 = arith.constant 0 : index
    %c0_23 = arith.constant 0 : index
    %20 = vector.load %arg2[%c0_21, %c3, %c0_22, %c0_23] : memref<1x16x16x128xbf16, #tpu.memory_space<vmem>>, vector<1x1x16x128xbf16>
    %21 = vector.shape_cast %20 : vector<1x1x16x128xbf16> to vector<16x128xbf16>
    %cst_24 = arith.constant dense<0.000000e+00> : vector<64x128xf32>
    %22 = tpu.matmul %0, %21, %cst_24 {dimension_numbers = #tpu.dot_dimension_numbers<[1], [0], [0], [1], [0, 0, 1, 1], [], []>} : vector<64x16xbf16>, vector<16x128xbf16>, vector<64x128xf32> -> vector<64x128xf32>
    %23 = arith.maximumf %19, %22 : vector<64x128xf32>
    %c0_25 = arith.constant 0 : index
    %c4 = arith.constant 4 : index
    %c0_26 = arith.constant 0 : index
    %c0_27 = arith.constant 0 : index
    %24 = vector.load %arg2[%c0_25, %c4, %c0_26, %c0_27] : memref<1x16x16x128xbf16, #tpu.memory_space<vmem>>, vector<1x1x16x128xbf16>
    %25 = vector.shape_cast %24 : vector<1x1x16x128xbf16> to vector<16x128xbf16>
    %cst_28 = arith.constant dense<0.000000e+00> : vector<64x128xf32>
    %26 = tpu.matmul %0, %25, %cst_28 {dimension_numbers = #tpu.dot_dimension_numbers<[1], [0], [0], [1], [0, 0, 1, 1], [], []>} : vector<64x16xbf16>, vector<16x128xbf16>, vector<64x128xf32> -> vector<64x128xf32>
    %27 = arith.maximumf %23, %26 : vector<64x128xf32>
    %c0_29 = arith.constant 0 : index
    %c5 = arith.constant 5 : index
    %c0_30 = arith.constant 0 : index
    %c0_31 = arith.constant 0 : index
    %28 = vector.load %arg2[%c0_29, %c5, %c0_30, %c0_31] : memref<1x16x16x128xbf16, #tpu.memory_space<vmem>>, vector<1x1x16x128xbf16>
    %29 = vector.shape_cast %28 : vector<1x1x16x128xbf16> to vector<16x128xbf16>
    %cst_32 = arith.constant dense<0.000000e+00> : vector<64x128xf32>
    %30 = tpu.matmul %0, %29, %cst_32 {dimension_numbers = #tpu.dot_dimension_numbers<[1], [0], [0], [1], [0, 0, 1, 1], [], []>} : vector<64x16xbf16>, vector<16x128xbf16>, vector<64x128xf32> -> vector<64x128xf32>
    %31 = arith.maximumf %27, %30 : vector<64x128xf32>
    %c0_33 = arith.constant 0 : index
    %c6 = arith.constant 6 : index
    %c0_34 = arith.constant 0 : index
    %c0_35 = arith.constant 0 : index
    %32 = vector.load %arg2[%c0_33, %c6, %c0_34, %c0_35] : memref<1x16x16x128xbf16, #tpu.memory_space<vmem>>, vector<1x1x16x128xbf16>
    %33 = vector.shape_cast %32 : vector<1x1x16x128xbf16> to vector<16x128xbf16>
    %cst_36 = arith.constant dense<0.000000e+00> : vector<64x128xf32>
    %34 = tpu.matmul %0, %33, %cst_36 {dimension_numbers = #tpu.dot_dimension_numbers<[1], [0], [0], [1], [0, 0, 1, 1], [], []>} : vector<64x16xbf16>, vector<16x128xbf16>, vector<64x128xf32> -> vector<64x128xf32>
    %35 = arith.maximumf %31, %34 : vector<64x128xf32>
    %c0_37 = arith.constant 0 : index
    %c7 = arith.constant 7 : index
    %c0_38 = arith.constant 0 : index
    %c0_39 = arith.constant 0 : index
    %36 = vector.load %arg2[%c0_37, %c7, %c0_38, %c0_39] : memref<1x16x16x128xbf16, #tpu.memory_space<vmem>>, vector<1x1x16x128xbf16>
    %37 = vector.shape_cast %36 : vector<1x1x16x128xbf16> to vector<16x128xbf16>
    %cst_40 = arith.constant dense<0.000000e+00> : vector<64x128xf32>
    %38 = tpu.matmul %0, %37, %cst_40 {dimension_numbers = #tpu.dot_dimension_numbers<[1], [0], [0], [1], [0, 0, 1, 1], [], []>} : vector<64x16xbf16>, vector<16x128xbf16>, vector<64x128xf32> -> vector<64x128xf32>
    %39 = arith.maximumf %35, %38 : vector<64x128xf32>
    %c0_41 = arith.constant 0 : index
    %c8 = arith.constant 8 : index
    %c0_42 = arith.constant 0 : index
    %c0_43 = arith.constant 0 : index
    %40 = vector.load %arg2[%c0_41, %c8, %c0_42, %c0_43] : memref<1x16x16x128xbf16, #tpu.memory_space<vmem>>, vector<1x1x16x128xbf16>
    %41 = vector.shape_cast %40 : vector<1x1x16x128xbf16> to vector<16x128xbf16>
    %cst_44 = arith.constant dense<0.000000e+00> : vector<64x128xf32>
    %42 = tpu.matmul %0, %41, %cst_44 {dimension_numbers = #tpu.dot_dimension_numbers<[1], [0], [0], [1], [0, 0, 1, 1], [], []>} : vector<64x16xbf16>, vector<16x128xbf16>, vector<64x128xf32> -> vector<64x128xf32>
    %43 = arith.maximumf %39, %42 : vector<64x128xf32>
    %c0_45 = arith.constant 0 : index
    %c9 = arith.constant 9 : index
    %c0_46 = arith.constant 0 : index
    %c0_47 = arith.constant 0 : index
    %44 = vector.load %arg2[%c0_45, %c9, %c0_46, %c0_47] : memref<1x16x16x128xbf16, #tpu.memory_space<vmem>>, vector<1x1x16x128xbf16>
    %45 = vector.shape_cast %44 : vector<1x1x16x128xbf16> to vector<16x128xbf16>
    %cst_48 = arith.constant dense<0.000000e+00> : vector<64x128xf32>
    %46 = tpu.matmul %0, %45, %cst_48 {dimension_numbers = #tpu.dot_dimension_numbers<[1], [0], [0], [1], [0, 0, 1, 1], [], []>} : vector<64x16xbf16>, vector<16x128xbf16>, vector<64x128xf32> -> vector<64x128xf32>
    %47 = arith.maximumf %43, %46 : vector<64x128xf32>
    %c0_49 = arith.constant 0 : index
    %c10 = arith.constant 10 : index
    %c0_50 = arith.constant 0 : index
    %c0_51 = arith.constant 0 : index
    %48 = vector.load %arg2[%c0_49, %c10, %c0_50, %c0_51] : memref<1x16x16x128xbf16, #tpu.memory_space<vmem>>, vector<1x1x16x128xbf16>
    %49 = vector.shape_cast %48 : vector<1x1x16x128xbf16> to vector<16x128xbf16>
    %cst_52 = arith.constant dense<0.000000e+00> : vector<64x128xf32>
    %50 = tpu.matmul %0, %49, %cst_52 {dimension_numbers = #tpu.dot_dimension_numbers<[1], [0], [0], [1], [0, 0, 1, 1], [], []>} : vector<64x16xbf16>, vector<16x128xbf16>, vector<64x128xf32> -> vector<64x128xf32>
    %51 = arith.maximumf %47, %50 : vector<64x128xf32>
    %c0_53 = arith.constant 0 : index
    %c11 = arith.constant 11 : index
    %c0_54 = arith.constant 0 : index
    %c0_55 = arith.constant 0 : index
    %52 = vector.load %arg2[%c0_53, %c11, %c0_54, %c0_55] : memref<1x16x16x128xbf16, #tpu.memory_space<vmem>>, vector<1x1x16x128xbf16>
    %53 = vector.shape_cast %52 : vector<1x1x16x128xbf16> to vector<16x128xbf16>
    %cst_56 = arith.constant dense<0.000000e+00> : vector<64x128xf32>
    %54 = tpu.matmul %0, %53, %cst_56 {dimension_numbers = #tpu.dot_dimension_numbers<[1], [0], [0], [1], [0, 0, 1, 1], [], []>} : vector<64x16xbf16>, vector<16x128xbf16>, vector<64x128xf32> -> vector<64x128xf32>
    %55 = arith.maximumf %51, %54 : vector<64x128xf32>
    %c0_57 = arith.constant 0 : index
    %c12 = arith.constant 12 : index
    %c0_58 = arith.constant 0 : index
    %c0_59 = arith.constant 0 : index
    %56 = vector.load %arg2[%c0_57, %c12, %c0_58, %c0_59] : memref<1x16x16x128xbf16, #tpu.memory_space<vmem>>, vector<1x1x16x128xbf16>
    %57 = vector.shape_cast %56 : vector<1x1x16x128xbf16> to vector<16x128xbf16>
    %cst_60 = arith.constant dense<0.000000e+00> : vector<64x128xf32>
    %58 = tpu.matmul %0, %57, %cst_60 {dimension_numbers = #tpu.dot_dimension_numbers<[1], [0], [0], [1], [0, 0, 1, 1], [], []>} : vector<64x16xbf16>, vector<16x128xbf16>, vector<64x128xf32> -> vector<64x128xf32>
    %59 = arith.maximumf %55, %58 : vector<64x128xf32>
    %c0_61 = arith.constant 0 : index
    %c13 = arith.constant 13 : index
    %c0_62 = arith.constant 0 : index
    %c0_63 = arith.constant 0 : index
    %60 = vector.load %arg2[%c0_61, %c13, %c0_62, %c0_63] : memref<1x16x16x128xbf16, #tpu.memory_space<vmem>>, vector<1x1x16x128xbf16>
    %61 = vector.shape_cast %60 : vector<1x1x16x128xbf16> to vector<16x128xbf16>
    %cst_64 = arith.constant dense<0.000000e+00> : vector<64x128xf32>
    %62 = tpu.matmul %0, %61, %cst_64 {dimension_numbers = #tpu.dot_dimension_numbers<[1], [0], [0], [1], [0, 0, 1, 1], [], []>} : vector<64x16xbf16>, vector<16x128xbf16>, vector<64x128xf32> -> vector<64x128xf32>
    %63 = arith.maximumf %59, %62 : vector<64x128xf32>
    %c0_65 = arith.constant 0 : index
    %c14 = arith.constant 14 : index
    %c0_66 = arith.constant 0 : index
    %c0_67 = arith.constant 0 : index
    %64 = vector.load %arg2[%c0_65, %c14, %c0_66, %c0_67] : memref<1x16x16x128xbf16, #tpu.memory_space<vmem>>, vector<1x1x16x128xbf16>
    %65 = vector.shape_cast %64 : vector<1x1x16x128xbf16> to vector<16x128xbf16>
    %cst_68 = arith.constant dense<0.000000e+00> : vector<64x128xf32>
    %66 = tpu.matmul %0, %65, %cst_68 {dimension_numbers = #tpu.dot_dimension_numbers<[1], [0], [0], [1], [0, 0, 1, 1], [], []>} : vector<64x16xbf16>, vector<16x128xbf16>, vector<64x128xf32> -> vector<64x128xf32>
    %67 = arith.maximumf %63, %66 : vector<64x128xf32>
    %c0_69 = arith.constant 0 : index
    %c15 = arith.constant 15 : index
    %c0_70 = arith.constant 0 : index
    %c0_71 = arith.constant 0 : index
    %68 = vector.load %arg2[%c0_69, %c15, %c0_70, %c0_71] : memref<1x16x16x128xbf16, #tpu.memory_space<vmem>>, vector<1x1x16x128xbf16>
    %69 = vector.shape_cast %68 : vector<1x1x16x128xbf16> to vector<16x128xbf16>
    %cst_72 = arith.constant dense<0.000000e+00> : vector<64x128xf32>
    %70 = tpu.matmul %0, %69, %cst_72 {dimension_numbers = #tpu.dot_dimension_numbers<[1], [0], [0], [1], [0, 0, 1, 1], [], []>} : vector<64x16xbf16>, vector<16x128xbf16>, vector<64x128xf32> -> vector<64x128xf32>
    %71 = arith.maximumf %67, %70 : vector<64x128xf32>
    %72 = arith.addf %71, %8 : vector<64x128xf32>
    %cst_73 = arith.constant 2.000000e-01 : f32
    %73 = vector.broadcast %cst_73 : f32 to vector<64x128xf32>
    %74 = arith.mulf %73, %72 : vector<64x128xf32>
    %75 = arith.maximumf %72, %74 : vector<64x128xf32>
    %c0_74 = arith.constant 0 : index
    %c0_75 = arith.constant 0 : index
    %c0_76 = arith.constant 0 : index
    %76 = vector.load %arg7[%c0_74, %c0_75, %c0_76] : memref<1x64x128xf32, #tpu.memory_space<vmem>>, vector<1x64x128xf32>
    %77 = vector.shape_cast %76 : vector<1x64x128xf32> to vector<64x128xf32>
    %78 = vector.shape_cast %75 : vector<64x128xf32> to vector<1x64x128xf32>
    tpu.vector_store %arg7[%c0_74, %c0_75, %c0_76], %78 {strides = array<i32>} : memref<1x64x128xf32, #tpu.memory_space<vmem>>, vector<1x64x128xf32>,
    return
  }
  func.func @transform_0(%arg0: i32, %arg1: i32) -> (i32, i32, i32, i32) {
    %c0_i32 = arith.constant 0 : i32
    %c0_i32_0 = arith.constant 0 : i32
    %c0_i32_1 = arith.constant 0 : i32
    return %arg0, %c0_i32, %c0_i32_0, %arg1 : i32, i32, i32, i32
  }
  func.func @transform_1(%arg0: i32, %arg1: i32) -> (i32, i32, i32) {
    %c0_i32 = arith.constant 0 : i32
    %c0_i32_0 = arith.constant 0 : i32
    return %arg0, %c0_i32, %arg1 : i32, i32, i32
  }
  func.func @transform_2(%arg0: i32, %arg1: i32) -> (i32, i32) {
    %c0_i32 = arith.constant 0 : i32
    %c0_i32_0 = arith.constant 0 : i32
    %c0_i32_1 = arith.constant 0 : i32
    return %c0_i32, %c0_i32_0 : i32, i32
  }
  func.func @transform_3(%arg0: i32, %arg1: i32) -> (i32, i32) {
    %c0_i32 = arith.constant 0 : i32
    %c0_i32_0 = arith.constant 0 : i32
    %c0_i32_1 = arith.constant 0 : i32
    return %c0_i32, %c0_i32_0 : i32, i32
  }
  func.func @transform_4(%arg0: i32, %arg1: i32) -> (i32, i32) {
    %c0_i32 = arith.constant 0 : i32
    %c0_i32_0 = arith.constant 0 : i32
    %c0_i32_1 = arith.constant 0 : i32
    return %c0_i32, %c0_i32_0 : i32, i32
  }
  func.func @transform_5(%arg0: i32, %arg1: i32) -> (i32, i32, i32) {
    %c0_i32 = arith.constant 0 : i32
    %c0_i32_0 = arith.constant 0 : i32
    return %arg0, %c0_i32, %arg1 : i32, i32, i32
  }
}

</mosaic_0001>

<llo_original>
// kernel: tpu_custom_call.1
$region0: #{tpu_custom_call.1}
  #allocation0 [shape = 'u32[]', space=smem, size = 0x4, offset = 0x4, fixed_abs, tag = 'smem constant byte address 0x4 - core index']
  #allocation1 [shape = 'u32[144,128]{1,0:T(1,128)}', space=vmem, size = 0x12000, scoped, tag = 'internal scratch']
  %s0 = inlined_call_operand.hbm [shape: bf16[2,16,16,128], index: 0, kind: input, shape index: {}]
  %s1 = inlined_call_operand.vmem [shape: f32[2,8,128], index: 1, kind: input, shape index: {}]
  %s2 = inlined_call_operand.vmem [shape: bf16[64,16], index: 2, kind: input, shape index: {}]
  %s3 = inlined_call_operand.vmem [shape: bf16[64,8], index: 3, kind: input, shape index: {}]
  %s4 = inlined_call_operand.vmem [shape: f32[64,1], index: 4, kind: input, shape index: {}]
  %s5 = inlined_call_operand.hbm [shape: f32[2,64,128], index: 5, kind: output, shape index: {}]
  %s6 = sld [smem:[#allocation0]]
  $region57: #{tpu_custom_call.1} parent=0
    _
  %s8 = ssub.s32 1, %s6
  %s9 = scalar_select 0, %s8, %s6
  $region1: #{tpu_custom_call.1} parent=0
    #allocation2 [shape = 'u8[131072]{0}', space=vmem, size = 0x20000, scoped, tag = 'input window, operand 0']
    #allocation3 [shape = 's32[2]{0}', space=sflag, size = 0x8, scoped, tag = 'scoped memory for tpu_custom_call.1']
    #allocation4 [shape = 's32[2]{0}', space=sflag, size = 0x8, scoped, tag = 'scoped memory for tpu_custom_call.1']
    #allocation5 [shape = 'u8[65536]{0}', space=vmem, size = 0x10000, scoped, tag = 'output window, operand 0']
    %10 = vsyncpa [#allocation3], 0
    %s11 = scalar_lea.sflag [#allocation3], 1
    %12 = vsyncpa %s11, 0
    %13 = vsyncpa [#allocation4], 0
    %s14 = scalar_lea.sflag [#allocation4], 1
    %15 = vsyncpa %s14, 0
    loop: start=0, step=1, limit=4
    $region2: #{tpu_custom_call.1} parent=1 // loop_pre_header
      _
    $region3: #{tpu_custom_call.1} parent=1 // loop_header
      %s17 = sphi 0, %s21
      %p18 = scmp.ge.s32.totalorder %s17, 4
      %s24 = sphi 0, %s36
      %s25 = sphi 0, %s32
      %s26 = sphi 0, %s24
      %s27 = sphi 0, %s25
      %s28 = sphi 0, %s26
      %s29 = sphi 0, %s27
      %s41 = sphi 0, %s43
      %s44 = sphi 0, %s41
      %s45 = sphi 0, %s44
      %s61 = sphi 0, %s45
      %s69 = sphi 0, %s71
      %s72 = sphi 0, %s69
      %s73 = sphi 0, %s72
      %s89 = sphi 0, %s73
      %s93 = sphi 0, %s93
      %s95 = sphi 0, %s93
      %s96 = sphi 0, %s95
      %s110 = sphi 0, %s96
      %s114 = sphi 0, %s114
      %s116 = sphi 0, %s114
      %s117 = sphi 0, %s116
      %s131 = sphi 0, %s117
      %s135 = sphi 0, %s135
      %s137 = sphi 0, %s135
      %s138 = sphi 0, %s137
      %s152 = sphi 0, %s138
      %s160 = sphi 0, %s162
      %s163 = sphi 0, %s160
      %s164 = sphi 0, %s163
      %s180 = sphi 0, %s164
    $region4: #{tpu_custom_call.1} parent=1 // loop_header_branch
      %20 = sbr.rel (%p18) target = $region8
    $region5: #{tpu_custom_call.1} parent=1 // loop_body
      %s22 = ssub.s32 %s17, 1
      %s23 = ssub.s32 %s17, 2
      %s30 = sadd.s32 1, %s25
      %p31 = scmp.ge.s32.totalorder %s30, 1
      %s32 = scalar_select %p31, 0, %s30
      %s33 = sadd.s32 1, %s24
      %s34 = scalar_select %p31, %s33, %s24
      %p35 = scmp.ge.s32.totalorder %s34, 2
      %s36 = scalar_select %p35, 0, %s34
      %s37 = ssub.s32 %s24, %s36
      %s38 = ssub.s32 %s25, %s32
      %s39 = sor.u32 %s37, %s38
      %p40 = scmp.eq.s32.totalorder %s39, 0
      %s42 = sadd.s32 %s41, 1
      %s43 = scalar_select %p40, %s41, %s42
      %p46 = pneg %p40
      %p47 = scmp.eq.s32.totalorder %s17, 1
      %p48 = por %p46, %p47
      %p49 = scmp.ne.s32.totalorder %s41, %s44
      %p50 = scmp.eq.s32.totalorder %s17, 0
      %p51 = por %p49, %p50
      %p52 = scmp.ne.s32.totalorder %s41, %s44
      %p53 = scmp.eq.s32.totalorder %s22, 1
      %p54 = por %p52, %p53
      %p55 = scmp.ne.s32.totalorder %s44, %s45
      %p56 = scmp.eq.s32.totalorder %s22, 0
      %p57 = por %p55, %p56
      %p58 = scmp.ne.s32.totalorder %s44, %s45
      %p59 = scmp.eq.s32.totalorder %s23, 1
      %p60 = por %p58, %p59
      %p62 = scmp.ne.s32.totalorder %s45, %s61
      %p63 = scmp.eq.s32.totalorder %s23, 0
      %p64 = por %p62, %p63
      %s65 = ssub.s32 %s24, %s36
      %s66 = ssub.s32 %s25, %s32
      %s67 = sor.u32 %s65, %s66
      %p68 = scmp.eq.s32.totalorder %s67, 0
      %s70 = sadd.s32 %s69, 1
      %s71 = scalar_select %p68, %s69, %s70
      %p74 = pneg %p68
      %p75 = scmp.eq.s32.totalorder %s17, 1
      %p76 = por %p74, %p75
      %p77 = scmp.ne.s32.totalorder %s69, %s72
      %p78 = scmp.eq.s32.totalorder %s17, 0
      %p79 = por %p77, %p78
      %p80 = scmp.ne.s32.totalorder %s69, %s72
      %p81 = scmp.eq.s32.totalorder %s22, 1
      %p82 = por %p80, %p81
      %p83 = scmp.ne.s32.totalorder %s72, %s73
      %p84 = scmp.eq.s32.totalorder %s22, 0
      %p85 = por %p83, %p84
      %p86 = scmp.ne.s32.totalorder %s72, %s73
      %p87 = scmp.eq.s32.totalorder %s23, 1
      %p88 = por %p86, %p87
      %p90 = scmp.ne.s32.totalorder %s73, %s89
      %p91 = scmp.eq.s32.totalorder %s23, 0
      %p92 = por %p90, %p91
      %s94 = sadd.s32 %s93, 1
      %p97 = scmp.eq.s32.totalorder %s17, 1
      %p98 = scmp.ne.s32.totalorder %s93, %s95
      %p99 = scmp.eq.s32.totalorder %s17, 0
      %p100 = por %p98, %p99
      %p101 = scmp.ne.s32.totalorder %s93, %s95
      %p102 = scmp.eq.s32.totalorder %s22, 1
      %p103 = por %p101, %p102
      %p104 = scmp.ne.s32.totalorder %s95, %s96
      %p105 = scmp.eq.s32.totalorder %s22, 0
      %p106 = por %p104, %p105
      %p107 = scmp.ne.s32.totalorder %s95, %s96
      %p108 = scmp.eq.s32.totalorder %s23, 1
      %p109 = por %p107, %p108
      %p111 = scmp.ne.s32.totalorder %s96, %s110
      %p112 = scmp.eq.s32.totalorder %s23, 0
      %p113 = por %p111, %p112
      %s115 = sadd.s32 %s114, 1
      %p118 = scmp.eq.s32.totalorder %s17, 1
      %p119 = scmp.ne.s32.totalorder %s114, %s116
      %p120 = scmp.eq.s32.totalorder %s17, 0
      %p121 = por %p119, %p120
      %p122 = scmp.ne.s32.totalorder %s114, %s116
      %p123 = scmp.eq.s32.totalorder %s22, 1
      %p124 = por %p122, %p123
      %p125 = scmp.ne.s32.totalorder %s116, %s117
      %p126 = scmp.eq.s32.totalorder %s22, 0
      %p127 = por %p125, %p126
      %p128 = scmp.ne.s32.totalorder %s116, %s117
      %p129 = scmp.eq.s32.totalorder %s23, 1
      %p130 = por %p128, %p129
      %p132 = scmp.ne.s32.totalorder %s117, %s131
      %p133 = scmp.eq.s32.totalorder %s23, 0
      %p134 = por %p132, %p133
      %s136 = sadd.s32 %s135, 1
      %p139 = scmp.eq.s32.totalorder %s17, 1
      %p140 = scmp.ne.s32.totalorder %s135, %s137
      %p141 = scmp.eq.s32.totalorder %s17, 0
      %p142 = por %p140, %p141
      %p143 = scmp.ne.s32.totalorder %s135, %s137
      %p144 = scmp.eq.s32.totalorder %s22, 1
      %p145 = por %p143, %p144
      %p146 = scmp.ne.s32.totalorder %s137, %s138
      %p147 = scmp.eq.s32.totalorder %s22, 0
      %p148 = por %p146, %p147
      %p149 = scmp.ne.s32.totalorder %s137, %s138
      %p150 = scmp.eq.s32.totalorder %s23, 1
      %p151 = por %p149, %p150
      %p153 = scmp.ne.s32.totalorder %s138, %s152
      %p154 = scmp.eq.s32.totalorder %s23, 0
      %p155 = por %p153, %p154
      %s156 = ssub.s32 %s24, %s36
      %s157 = ssub.s32 %s25, %s32
      %s158 = sor.u32 %s156, %s157
      %p159 = scmp.eq.s32.totalorder %s158, 0
      %s161 = sadd.s32 %s160, 1
      %s162 = scalar_select %p159, %s160, %s161
      %p165 = pneg %p159
      %p166 = scmp.eq.s32.totalorder %s17, 1
      %p167 = por %p165, %p166
      %p168 = scmp.ne.s32.totalorder %s160, %s163
      %p169 = scmp.eq.s32.totalorder %s17, 0
      %p170 = por %p168, %p169
      %p171 = scmp.ne.s32.totalorder %s160, %s163
      %p172 = scmp.eq.s32.totalorder %s22, 1
      %p173 = por %p171, %p172
      %p174 = scmp.ne.s32.totalorder %s163, %s164
      %p175 = scmp.eq.s32.totalorder %s22, 0
      %p176 = por %p174, %p175
      %p177 = scmp.ne.s32.totalorder %s163, %s164
      %p178 = scmp.eq.s32.totalorder %s23, 1
      %p179 = por %p177, %p178
      %p181 = scmp.ne.s32.totalorder %s164, %s180
      %p182 = scmp.eq.s32.totalorder %s23, 0
      %p183 = por %p181, %p182
      %p184 = scmp.le.s32.totalorder 1, %s17
      %p185 = scmp.lt.s32.totalorder %s17, 3
      %p186 = pnand %p184, %p185
      %p187 = pneg %p186
      // Predicated region
      $region9: #{tpu_custom_call.1} parent=5 // pred_check
        _
      $region10: #{tpu_custom_call.1} parent=5 // pred_check_branch
        %189 = sbr.rel (%p186) target = $region12
      $region11: #{tpu_custom_call.1} parent=5 // pred_region
        %s190 = ssub.s32 %s17, 1
        // Predicated region
        $region13: #{tpu_custom_call.1} parent=11 // pred_check
          %p191 = pneg %p106
        $region14: #{tpu_custom_call.1} parent=11 // pred_check_branch
          %193 = sbr.rel (%p191) target = $region16
        $region15: #{tpu_custom_call.1} parent=11 // pred_region
          _
        $region16: #{tpu_custom_call.1} parent=11 // pred_fallthru
          _
        // Predicated region
        $region17: #{tpu_custom_call.1} parent=11 // pred_check
          %p194 = pneg %p127
        $region18: #{tpu_custom_call.1} parent=11 // pred_check_branch
          %196 = sbr.rel (%p194) target = $region20
        $region19: #{tpu_custom_call.1} parent=11 // pred_region
          _
        $region20: #{tpu_custom_call.1} parent=11 // pred_fallthru
          _
        // Predicated region
        $region21: #{tpu_custom_call.1} parent=11 // pred_check
          %p197 = pneg %p148
        $region22: #{tpu_custom_call.1} parent=11 // pred_check_branch
          %199 = sbr.rel (%p197) target = $region24
        $region23: #{tpu_custom_call.1} parent=11 // pred_region
          _
        $region24: #{tpu_custom_call.1} parent=11 // pred_fallthru
          _
      $region12: #{tpu_custom_call.1} parent=5 // pred_fallthru
        _
      %p200 = scmp.lt.s32.totalorder %s17, 2
      // Predicated region
      $region25: #{tpu_custom_call.1} parent=5 // pred_check
        %p201 = pneg %p200
      $region26: #{tpu_custom_call.1} parent=5 // pred_check_branch
        %203 = sbr.rel (%p201) target = $region28
      $region27: #{tpu_custom_call.1} parent=5 // pred_region
        // Predicated region
        $region29: #{tpu_custom_call.1} parent=27 // pred_check
          %p204 = pneg %p51
        $region30: #{tpu_custom_call.1} parent=27 // pred_check_branch
          %206 = sbr.rel (%p204) target = $region32
        $region31: #{tpu_custom_call.1} parent=27 // pred_region
          %s207 = sand.u32 %s41, 1
          %s208 = scalar_lea.sflag [#allocation3], %s207
          %s209 = sand.u32 %s41, 1
          %s210 = smul.addr %s209, 128
          %s211 = scalar_lea.vmem [#allocation2], %s210
          %s213 = ssub.s32 2048, 2048
          %214 = vsyncadd %s208, %s213
          %s215 = smul.addr %s24, 32
          %s216 = sadd.s32 %s25, %s215
          %s217 = smul.addr %s216, 64
          %s218 = scalar_lea.hbm %s0, %s217
          %s219 = sshll.u32 %s211, 4
          %s220 = int_to_ptr.vmem [resolvable:$true] %s219
          %225 = dma.hbm_to_vmem [thread:$0]  %s218, 2048, %s220, %s208, 64, 64, 4
        $region32: #{tpu_custom_call.1} parent=27 // pred_fallthru
          _
        // Predicated region
        $region33: #{tpu_custom_call.1} parent=27 // pred_check
          %p226 = pneg %p79
        $region34: #{tpu_custom_call.1} parent=27 // pred_check_branch
          %228 = sbr.rel (%p226) target = $region36
        $region35: #{tpu_custom_call.1} parent=27 // pred_region
          %p229 = scmp.lt.s32.totalorder %s24, 1
          %s230 = scalar_select %p229, %s24, 1
          %p231 = scmp.lt.s32.totalorder %s25, 0
          %s232 = scalar_select %p231, %s25, 0
          %s233 = sadd.s32 %s232, %s230
          %s234 = smul.addr %s233, 8
          %s235 = scalar_lea.vmem %s1, %s234
        $region36: #{tpu_custom_call.1} parent=27 // pred_fallthru
          _
      $region28: #{tpu_custom_call.1} parent=5 // pred_fallthru
        _
      %p236 = scmp.le.s32.totalorder 1, %s17
      %p237 = scmp.lt.s32.totalorder %s17, 3
      %p238 = pnand %p236, %p237
      %p239 = pneg %p238
      // Predicated region
      $region37: #{tpu_custom_call.1} parent=5 // pred_check
        _
      $region38: #{tpu_custom_call.1} parent=5 // pred_check_branch
        %241 = sbr.rel (%p238) target = $region40
      $region39: #{tpu_custom_call.1} parent=5 // pred_region
        %s242 = ssub.s32 %s17, 1
        %s243 = sand.u32 %s44, 1
        %s244 = scalar_lea.sflag [#allocation3], %s243
        %s245 = sand.u32 %s44, 1
        %s246 = smul.addr %s245, 128
        %s247 = scalar_lea.vmem [#allocation2], %s246
        // Predicated region
        $region41: #{tpu_custom_call.1} parent=39 // pred_check
          %p248 = pneg %p57
        $region42: #{tpu_custom_call.1} parent=39 // pred_check_branch
          %250 = sbr.rel (%p248) target = $region44
        $region43: #{tpu_custom_call.1} parent=39 // pred_region
          %251 = dma.done %s244, 2048
        $region44: #{tpu_custom_call.1} parent=39 // pred_fallthru
          _
        %s252 = sand.u32 %s44, 1
        %s253 = scalar_lea.sflag [#allocation3], %s252
        %s254 = sand.u32 %s44, 1
        %s255 = smul.addr %s254, 128
        %s256 = scalar_lea.vmem [#allocation2], %s255
        %p257 = pneg %p57
        %p258 = pneg %p54
        %p259 = scmp.lt.s32.totalorder %s26, 1
        %s260 = scalar_select %p259, %s26, 1
        %p261 = scmp.lt.s32.totalorder %s27, 0
        %s262 = scalar_select %p261, %s27, 0
        %s263 = sadd.s32 %s262, %s260
        %s264 = smul.addr %s263, 8
        %s265 = scalar_lea.vmem %s1, %s264
        %p266 = pneg %p85
        %p267 = pneg %p82
        %p268 = pneg %p106
        %p269 = pneg %p103
        %p270 = pneg %p127
        %p271 = pneg %p124
        %p272 = pneg %p148
        %p273 = pneg %p145
        %p274 = pneg %p176
        %p275 = pneg %p173
        %s276 = sand.u32 %s163, 1
        %s277 = scalar_lea.sflag [#allocation4], %s276
        %s278 = sand.u32 %s163, 1
        %s279 = smul.addr %s278, 64
        %s280 = scalar_lea.vmem [#allocation5], %s279
        %p281 = scmp.lt.s32.totalorder %s26, 1
        %s282 = scalar_select %p281, %s26, 1
        %p283 = scmp.lt.s32.totalorder %s27, 0
        %s284 = scalar_select %p283, %s27, 0
        %s285 = sadd.s32 %s284, %s282
        %s286 = smul.addr %s285, 8
        %s287 = scalar_lea.vmem %s1, %s286
        %v289 = vld [vmem:[%s2] sm:$0xf]
        %v290 = vld [vmem:[%s2 + $0x4] sm:$0xf]
        %v291 = vld [vmem:[%s2 + $0x8] sm:$0xf]
        %v292 = vld [vmem:[%s2 + $0xc] sm:$0xf]
        %v293 = vld [vmem:[%s2 + $0x10] sm:$0xf]
        %v294 = vld [vmem:[%s2 + $0x14] sm:$0xf]
        %v295 = vld [vmem:[%s2 + $0x18] sm:$0xf]
        %v296 = vld [vmem:[%s2 + $0x1c] sm:$0xf]
        %v297 = vld [vmem:[%s3] sm:$0xf]
        %v298 = vld [vmem:[%s3 + $0x4] sm:$0xf]
        %v299 = vld [vmem:[%s3 + $0x8] sm:$0xf]
        %v300 = vld [vmem:[%s3 + $0xc] sm:$0xf]
        %v301 = vld [vmem:[%s3 + $0x10] sm:$0xf]
        %v302 = vld [vmem:[%s3 + $0x14] sm:$0xf]
        %v303 = vld [vmem:[%s3 + $0x18] sm:$0xf]
        %v304 = vld [vmem:[%s3 + $0x1c] sm:$0xf]
        %v305 = vld [vmem:[%s4] sm:$0xff]
        %v306 = vld [vmem:[%s4 + $0x8] sm:$0xff]
        %v307 = vld [vmem:[%s4 + $0x10] sm:$0xff]
        %v308 = vld [vmem:[%s4 + $0x18] sm:$0xff]
        %v309 = vld [vmem:[%s4 + $0x20] sm:$0xff]
        %v310 = vld [vmem:[%s4 + $0x28] sm:$0xff]
        %v311 = vld [vmem:[%s4 + $0x30] sm:$0xff]
        %v312 = vld [vmem:[%s4 + $0x38] sm:$0xff]
        %v313 = vld [vmem:[%s287] sm:$0xff]
        %v314 = vpack.c.bf16 %v313, %v313
        %316 = vset.pattern.permute.xlu0 0
        %317 = vperm.xlu0 %316, %v305
        %v318 = vpop.permute.xlu0 %317
        %321 = vset.pattern.permute.xlu0 0
        %322 = vperm.xlu0 %321, %v306
        %v323 = vpop.permute.xlu0 %322
        %326 = vset.pattern.permute.xlu0 0
        %327 = vperm.xlu0 %326, %v307
        %v328 = vpop.permute.xlu0 %327
        %331 = vset.pattern.permute.xlu0 0
        %332 = vperm.xlu0 %331, %v308
        %v333 = vpop.permute.xlu0 %332
        %336 = vset.pattern.permute.xlu0 0
        %337 = vperm.xlu0 %336, %v309
        %v338 = vpop.permute.xlu0 %337
        %341 = vset.pattern.permute.xlu0 0
        %342 = vperm.xlu0 %341, %v310
        %v343 = vpop.permute.xlu0 %342
        %346 = vset.pattern.permute.xlu0 0
        %347 = vperm.xlu0 %346, %v311
        %v348 = vpop.permute.xlu0 %347
        %351 = vset.pattern.permute.xlu0 0
        %352 = vperm.xlu0 %351, %v312
        %v353 = vpop.permute.xlu0 %352
        %v363 = vunpack.c.l.b16 %v297
        %v364 = vunpack.c.l.b16 %v298
        %v365 = vunpack.c.l.b16 %v299
        %v366 = vunpack.c.l.b16 %v300
        %v367 = vunpack.c.l.b16 %v301
        %v368 = vunpack.c.l.b16 %v302
        %v369 = vunpack.c.l.b16 %v303
        %v370 = vunpack.c.l.b16 %v304
        %v371 = vpack.c.b16 %v364, %v363
        %v372 = vpack.c.b16 %v366, %v365
        %v373 = vpack.c.b16 %v368, %v367
        %v374 = vpack.c.b16 %v370, %v369
        %vm375 = vcmask 64512
        %v377 = vsel %vm375, %v371, 0
        %v380 = vsel %vm375, %v372, 0
        %v383 = vsel %vm375, %v373, 0
        %v386 = vsel %vm375, %v374, 0
        %vm388 = vcmask 1043456
        %v390 = vsel %vm388, %v314, 0
        %392 = vmatprep.subr.bf16.mxu0 0
        %393 = vmatpush1.bf16.msra.mxu0 0
        %394 = vmatprep.subr.bf16.mxu0 0
        %395 = vmatpush1.bf16.msra.mxu0 0
        %396 = vmatprep.subr.bf16.mxu0 0
        %397 = vmatpush1.bf16.msra.mxu0 0
        %398 = vmatprep.subr.bf16.mxu0 0
        %399 = vmatpush1.bf16.msra.mxu0 0
        %400 = vmatprep.subr.bf16.mxu0 0
        %401 = vmatpush1.bf16.msra.mxu0 0
        %402 = vmatprep.subr.bf16.mxu0 0
        %403 = vmatpush1.bf16.msra.mxu0 0
        %404 = vmatprep.subr.bf16.mxu0 0
        %405 = vmatpush1.bf16.msra.mxu0 0
        %406 = vmatprep.subr.bf16.mxu0 0
        %407 = vmatpush1.bf16.msra.mxu0 %v390
        %408 = vmatprep.subr.bf16.mxu0 0
        %409 = vmatpush2.bf16.msra.mxu0 0
        %410 = vmatprep.subr.bf16.mxu0 0
        %411 = vmatpush2.bf16.msra.mxu0 0
        %412 = vmatprep.subr.bf16.mxu0 0
        %413 = vmatpush2.bf16.msra.mxu0 0
        %414 = vmatprep.subr.bf16.mxu0 0
        %415 = vmatpush2.bf16.msra.mxu0 0
        %416 = vmatprep.subr.bf16.mxu0 0
        %417 = vmatpush2.bf16.msra.mxu0 0
        %418 = vmatprep.subr.bf16.mxu0 0
        %419 = vmatpush2.bf16.msra.mxu0 0
        %420 = vmatprep.subr.bf16.mxu0 0
        %421 = vmatpush2.bf16.msra.mxu0 0
        %422 = vmatprep.subr.bf16.mxu0 0
        %423 = vmatpush2.bf16.msra.mxu0 0
        %424 = vmatprep.mubr.bf16.mxu0 0
        %425 = vmatmul.mubr.bf16.gmra.mxu0 %v377
        %v426 = vpop.f32.mrf.mxu0
        %v427 = vadd.f32 %v318, %v426
        %v428 = vpop.f32.mrf.mxu0
        %v429 = vpop.f32.mrf.mxu0
        %v430 = vadd.f32 %v323, %v429
        %v431 = vpop.f32.mrf.mxu0
        %432 = vmatprep.mubr.bf16.mxu0 0
        %433 = vmatmul.mubr.bf16.gmra.mxu0 %v380
        %v434 = vpop.f32.mrf.mxu0
        %v435 = vadd.f32 %v328, %v434
        %v436 = vpop.f32.mrf.mxu0
        %v437 = vpop.f32.mrf.mxu0
        %v438 = vadd.f32 %v333, %v437
        %v439 = vpop.f32.mrf.mxu0
        %440 = vmatprep.mubr.bf16.mxu0 0
        %441 = vmatmul.mubr.bf16.gmra.mxu0 %v383
        %v442 = vpop.f32.mrf.mxu0
        %v443 = vadd.f32 %v338, %v442
        %v444 = vpop.f32.mrf.mxu0
        %v445 = vpop.f32.mrf.mxu0
        %v446 = vadd.f32 %v343, %v445
        %v447 = vpop.f32.mrf.mxu0
        %448 = vmatprep.mubr.bf16.mxu0 0
        %449 = vmatmul.mubr.bf16.gmra.mxu0 %v386
        %v450 = vpop.f32.mrf.mxu0
        %v451 = vadd.f32 %v348, %v450
        %v452 = vpop.f32.mrf.mxu0
        %v453 = vpop.f32.mrf.mxu0
        %v454 = vadd.f32 %v353, %v453
        %v455 = vpop.f32.mrf.mxu0
        %456 = vdwg.mxu0
        %v457 = vld [vmem:[%s247] sm:$0xf]
        %v458 = vld [vmem:[%s247 + $0x4] sm:$0xf]
        %v467 = vunpack.c.l.b16 %v289
        %v468 = vunpack.c.l.b16 %v290
        %v469 = vunpack.c.l.b16 %v291
        %v470 = vunpack.c.l.b16 %v292
        %v471 = vunpack.c.l.b16 %v293
        %v472 = vunpack.c.l.b16 %v294
        %v473 = vunpack.c.l.b16 %v295
        %v474 = vunpack.c.l.b16 %v296
        %v475 = vpack.c.b16 %v468, %v467
        %v476 = vpack.c.b16 %v470, %v469
        %v477 = vpack.c.b16 %v472, %v471
        %v478 = vpack.c.b16 %v474, %v473
        %v481 = vunpack.c.l.b16 %v457
        %v482 = vunpack.c.l.b16 %v458
        %v483 = vpack.c.b16 %v482, %v481
        %vm485 = vcmask 130048
        %v487 = vsel %vm485, %v475, 0
        %v490 = vsel %vm485, %v476, 0
        %v493 = vsel %vm485, %v477, 0
        %v496 = vsel %vm485, %v478, 0
        %498 = vmatprep.subr.bf16.mxu0 0
        %499 = vmatpush1.bf16.msra.mxu0 0
        %500 = vmatprep.subr.bf16.mxu0 0
        %501 = vmatpush1.bf16.msra.mxu0 0
        %502 = vmatprep.subr.bf16.mxu0 0
        %503 = vmatpush1.bf16.msra.mxu0 0
        %504 = vmatprep.subr.bf16.mxu0 0
        %505 = vmatpush1.bf16.msra.mxu0 0
        %506 = vmatprep.subr.bf16.mxu0 0
        %507 = vmatpush1.bf16.msra.mxu0 0
        %508 = vmatprep.subr.bf16.mxu0 0
        %509 = vmatpush1.bf16.msra.mxu0 0
        %510 = vmatprep.subr.bf16.mxu0 0
        %511 = vmatpush1.bf16.msra.mxu0 0
        %512 = vmatprep.subr.bf16.mxu0 0
        %513 = vmatpush1.bf16.msra.mxu0 %v483
        %514 = vmatprep.subr.bf16.mxu0 0
        %515 = vmatpush2.bf16.msra.mxu0 0
        %516 = vmatprep.subr.bf16.mxu0 0
        %517 = vmatpush2.bf16.msra.mxu0 0
        %518 = vmatprep.subr.bf16.mxu0 0
        %519 = vmatpush2.bf16.msra.mxu0 0
        %520 = vmatprep.subr.bf16.mxu0 0
        %521 = vmatpush2.bf16.msra.mxu0 0
        %522 = vmatprep.subr.bf16.mxu0 0
        %523 = vmatpush2.bf16.msra.mxu0 0
        %524 = vmatprep.subr.bf16.mxu0 0
        %525 = vmatpush2.bf16.msra.mxu0 0
        %526 = vmatprep.subr.bf16.mxu0 0
        %527 = vmatpush2.bf16.msra.mxu0 0
        %528 = vmatprep.subr.bf16.mxu0 0
        %529 = vmatpush2.bf16.msra.mxu0 0
        %530 = vmatprep.mubr.bf16.mxu0 0
        %531 = vmatmul.mubr.bf16.gmra.mxu0 %v487
        %v532 = vpop.f32.mrf.mxu0
        %v533 = vadd.f32 0.0, %v532
        %v534 = vpop.f32.mrf.mxu0
        %v535 = vpop.f32.mrf.mxu0
        %v536 = vadd.f32 0.0, %v535
        %v537 = vpop.f32.mrf.mxu0
        %538 = vmatprep.mubr.bf16.mxu0 0
        %539 = vmatmul.mubr.bf16.gmra.mxu0 %v490
        %v540 = vpop.f32.mrf.mxu0
        %v541 = vadd.f32 0.0, %v540
        %v542 = vpop.f32.mrf.mxu0
        %v543 = vpop.f32.mrf.mxu0
        %v544 = vadd.f32 0.0, %v543
        %v545 = vpop.f32.mrf.mxu0
        %546 = vmatprep.mubr.bf16.mxu0 0
        %547 = vmatmul.mubr.bf16.gmra.mxu0 %v493
        %v548 = vpop.f32.mrf.mxu0
        %v549 = vadd.f32 0.0, %v548
        %v550 = vpop.f32.mrf.mxu0
        %v551 = vpop.f32.mrf.mxu0
        %v552 = vadd.f32 0.0, %v551
        %v553 = vpop.f32.mrf.mxu0
        %554 = vmatprep.mubr.bf16.mxu0 0
        %555 = vmatmul.mubr.bf16.gmra.mxu0 %v496
        %v556 = vpop.f32.mrf.mxu0
        %v557 = vadd.f32 0.0, %v556
        %v558 = vpop.f32.mrf.mxu0
        %v559 = vpop.f32.mrf.mxu0
        %v560 = vadd.f32 0.0, %v559
        %v561 = vpop.f32.mrf.mxu0
        %562 = vdwg.mxu0
        %s563 = scalar_lea.vmem %s247, 8 [#allocation2]
        %v564 = vld [vmem:[%s563] sm:$0xf]
        %v565 = vld [vmem:[%s563 + $0x4] sm:$0xf]
        %v568 = vunpack.c.l.b16 %v564
        %v569 = vunpack.c.l.b16 %v565
        %v570 = vpack.c.b16 %v569, %v568
        %572 = vmatprep.subr.bf16.mxu0 0
        %573 = vmatpush1.bf16.msra.mxu0 0
        %574 = vmatprep.subr.bf16.mxu0 0
        %575 = vmatpush1.bf16.msra.mxu0 0
        %576 = vmatprep.subr.bf16.mxu0 0
        %577 = vmatpush1.bf16.msra.mxu0 0
        %578 = vmatprep.subr.bf16.mxu0 0
        %579 = vmatpush1.bf16.msra.mxu0 0
        %580 = vmatprep.subr.bf16.mxu0 0
        %581 = vmatpush1.bf16.msra.mxu0 0
        %582 = vmatprep.subr.bf16.mxu0 0
        %583 = vmatpush1.bf16.msra.mxu0 0
        %584 = vmatprep.subr.bf16.mxu0 0
        %585 = vmatpush1.bf16.msra.mxu0 0
        %586 = vmatprep.subr.bf16.mxu0 0
        %587 = vmatpush1.bf16.msra.mxu0 %v570
        %588 = vmatprep.subr.bf16.mxu0 0
        %589 = vmatpush2.bf16.msra.mxu0 0
        %590 = vmatprep.subr.bf16.mxu0 0
        %591 = vmatpush2.bf16.msra.mxu0 0
        %592 = vmatprep.subr.bf16.mxu0 0
        %593 = vmatpush2.bf16.msra.mxu0 0
        %594 = vmatprep.subr.bf16.mxu0 0
        %595 = vmatpush2.bf16.msra.mxu0 0
        %596 = vmatprep.subr.bf16.mxu0 0
        %597 = vmatpush2.bf16.msra.mxu0 0
        %598 = vmatprep.subr.bf16.mxu0 0
        %599 = vmatpush2.bf16.msra.mxu0 0
        %600 = vmatprep.subr.bf16.mxu0 0
        %601 = vmatpush2.bf16.msra.mxu0 0
        %602 = vmatprep.subr.bf16.mxu0 0
        %603 = vmatpush2.bf16.msra.mxu0 0
        %604 = vmatprep.mubr.bf16.mxu0 0
        %605 = vmatmul.mubr.bf16.gmra.mxu0 %v487
        %v606 = vpop.f32.mrf.mxu0
        %v607 = vadd.f32 0.0, %v606
        %v608 = vpop.f32.mrf.mxu0
        %v609 = vpop.f32.mrf.mxu0
        %v610 = vadd.f32 0.0, %v609
        %v611 = vpop.f32.mrf.mxu0
        %612 = vmatprep.mubr.bf16.mxu0 0
        %613 = vmatmul.mubr.bf16.gmra.mxu0 %v490
        %v614 = vpop.f32.mrf.mxu0
        %v615 = vadd.f32 0.0, %v614
        %v616 = vpop.f32.mrf.mxu0
        %v617 = vpop.f32.mrf.mxu0
        %v618 = vadd.f32 0.0, %v617
        %v619 = vpop.f32.mrf.mxu0
        %620 = vmatprep.mubr.bf16.mxu0 0
        %621 = vmatmul.mubr.bf16.gmra.mxu0 %v493
        %v622 = vpop.f32.mrf.mxu0
        %v623 = vadd.f32 0.0, %v622
        %v624 = vpop.f32.mrf.mxu0
        %v625 = vpop.f32.mrf.mxu0
        %v626 = vadd.f32 0.0, %v625
        %v627 = vpop.f32.mrf.mxu0
        %628 = vmatprep.mubr.bf16.mxu0 0
        %629 = vmatmul.mubr.bf16.gmra.mxu0 %v496
        %v630 = vpop.f32.mrf.mxu0
        %v631 = vadd.f32 0.0, %v630
        %v632 = vpop.f32.mrf.mxu0
        %v633 = vpop.f32.mrf.mxu0
        %v634 = vadd.f32 0.0, %v633
        %v635 = vpop.f32.mrf.mxu0
        %636 = vdwg.mxu0
        %v637 = vmax.f32 %v533, %v607
        %v638 = vmax.f32 %v536, %v610
        %v639 = vmax.f32 %v541, %v615
        %v640 = vmax.f32 %v544, %v618
        %v641 = vmax.f32 %v549, %v623
        %v642 = vmax.f32 %v552, %v626
        %v643 = vmax.f32 %v557, %v631
        %v644 = vmax.f32 %v560, %v634
        %s645 = scalar_lea.vmem %s247, 16 [#allocation2]
        %v646 = vld [vmem:[%s645] sm:$0xf]
        %v647 = vld [vmem:[%s645 + $0x4] sm:$0xf]
        %v650 = vunpack.c.l.b16 %v646
        %v651 = vunpack.c.l.b16 %v647
        %v652 = vpack.c.b16 %v651, %v650
        %654 = vmatprep.subr.bf16.mxu0 0
        %655 = vmatpush1.bf16.msra.mxu0 0
        %656 = vmatprep.subr.bf16.mxu0 0
        %657 = vmatpush1.bf16.msra.mxu0 0
        %658 = vmatprep.subr.bf16.mxu0 0
        %659 = vmatpush1.bf16.msra.mxu0 0
        %660 = vmatprep.subr.bf16.mxu0 0
        %661 = vmatpush1.bf16.msra.mxu0 0
        %662 = vmatprep.subr.bf16.mxu0 0
        %663 = vmatpush1.bf16.msra.mxu0 0
        %664 = vmatprep.subr.bf16.mxu0 0
        %665 = vmatpush1.bf16.msra.mxu0 0
        %666 = vmatprep.subr.bf16.mxu0 0
        %667 = vmatpush1.bf16.msra.mxu0 0
        %668 = vmatprep.subr.bf16.mxu0 0
        %669 = vmatpush1.bf16.msra.mxu0 %v652
        %670 = vmatprep.subr.bf16.mxu0 0
        %671 = vmatpush2.bf16.msra.mxu0 0
        %672 = vmatprep.subr.bf16.mxu0 0
        %673 = vmatpush2.bf16.msra.mxu0 0
        %674 = vmatprep.subr.bf16.mxu0 0
        %675 = vmatpush2.bf16.msra.mxu0 0
        %676 = vmatprep.subr.bf16.mxu0 0
        %677 = vmatpush2.bf16.msra.mxu0 0
        %678 = vmatprep.subr.bf16.mxu0 0
        %679 = vmatpush2.bf16.msra.mxu0 0
        %680 = vmatprep.subr.bf16.mxu0 0
        %681 = vmatpush2.bf16.msra.mxu0 0
        %682 = vmatprep.subr.bf16.mxu0 0
        %683 = vmatpush2.bf16.msra.mxu0 0
        %684 = vmatprep.subr.bf16.mxu0 0
        %685 = vmatpush2.bf16.msra.mxu0 0
        %686 = vmatprep.mubr.bf16.mxu0 0
        %687 = vmatmul.mubr.bf16.gmra.mxu0 %v487
        %v688 = vpop.f32.mrf.mxu0
        %v689 = vadd.f32 0.0, %v688
        %v690 = vpop.f32.mrf.mxu0
        %v691 = vpop.f32.mrf.mxu0
        %v692 = vadd.f32 0.0, %v691
        %v693 = vpop.f32.mrf.mxu0
        %694 = vmatprep.mubr.bf16.mxu0 0
        %695 = vmatmul.mubr.bf16.gmra.mxu0 %v490
        %v696 = vpop.f32.mrf.mxu0
        %v697 = vadd.f32 0.0, %v696
        %v698 = vpop.f32.mrf.mxu0
        %v699 = vpop.f32.mrf.mxu0
        %v700 = vadd.f32 0.0, %v699
        %v701 = vpop.f32.mrf.mxu0
        %702 = vmatprep.mubr.bf16.mxu0 0
        %703 = vmatmul.mubr.bf16.gmra.mxu0 %v493
        %v704 = vpop.f32.mrf.mxu0
        %v705 = vadd.f32 0.0, %v704
        %v706 = vpop.f32.mrf.mxu0
        %v707 = vpop.f32.mrf.mxu0
        %v708 = vadd.f32 0.0, %v707
        %v709 = vpop.f32.mrf.mxu0
        %710 = vmatprep.mubr.bf16.mxu0 0
        %711 = vmatmul.mubr.bf16.gmra.mxu0 %v496
        %v712 = vpop.f32.mrf.mxu0
        %v713 = vadd.f32 0.0, %v712
        %v714 = vpop.f32.mrf.mxu0
        %v715 = vpop.f32.mrf.mxu0
        %v716 = vadd.f32 0.0, %v715
        %v717 = vpop.f32.mrf.mxu0
        %718 = vdwg.mxu0
        %v719 = vmax.f32 %v637, %v689
        %v720 = vmax.f32 %v638, %v692
        %v721 = vmax.f32 %v639, %v697
        %v722 = vmax.f32 %v640, %v700
        %v723 = vmax.f32 %v641, %v705
        %v724 = vmax.f32 %v642, %v708
        %v725 = vmax.f32 %v643, %v713
        %v726 = vmax.f32 %v644, %v716
        %s727 = scalar_lea.vmem %s247, 24 [#allocation2]
        %v728 = vld [vmem:[%s727] sm:$0xf]
        %v729 = vld [vmem:[%s727 + $0x4] sm:$0xf]
        %v732 = vunpack.c.l.b16 %v728
        %v733 = vunpack.c.l.b16 %v729
        %v734 = vpack.c.b16 %v733, %v732
        %736 = vmatprep.subr.bf16.mxu0 0
        %737 = vmatpush1.bf16.msra.mxu0 0
        %738 = vmatprep.subr.bf16.mxu0 0
        %739 = vmatpush1.bf16.msra.mxu0 0
        %740 = vmatprep.subr.bf16.mxu0 0
        %741 = vmatpush1.bf16.msra.mxu0 0
        %742 = vmatprep.subr.bf16.mxu0 0
        %743 = vmatpush1.bf16.msra.mxu0 0
        %744 = vmatprep.subr.bf16.mxu0 0
        %745 = vmatpush1.bf16.msra.mxu0 0
        %746 = vmatprep.subr.bf16.mxu0 0
        %747 = vmatpush1.bf16.msra.mxu0 0
        %748 = vmatprep.subr.bf16.mxu0 0
        %749 = vmatpush1.bf16.msra.mxu0 0
        %750 = vmatprep.subr.bf16.mxu0 0
        %751 = vmatpush1.bf16.msra.mxu0 %v734
        %752 = vmatprep.subr.bf16.mxu0 0
        %753 = vmatpush2.bf16.msra.mxu0 0
        %754 = vmatprep.subr.bf16.mxu0 0
        %755 = vmatpush2.bf16.msra.mxu0 0
        %756 = vmatprep.subr.bf16.mxu0 0
        %757 = vmatpush2.bf16.msra.mxu0 0
        %758 = vmatprep.subr.bf16.mxu0 0
        %759 = vmatpush2.bf16.msra.mxu0 0
        %760 = vmatprep.subr.bf16.mxu0 0
        %761 = vmatpush2.bf16.msra.mxu0 0
        %762 = vmatprep.subr.bf16.mxu0 0
        %763 = vmatpush2.bf16.msra.mxu0 0
        %764 = vmatprep.subr.bf16.mxu0 0
        %765 = vmatpush2.bf16.msra.mxu0 0
        %766 = vmatprep.subr.bf16.mxu0 0
        %767 = vmatpush2.bf16.msra.mxu0 0
        %768 = vmatprep.mubr.bf16.mxu0 0
        %769 = vmatmul.mubr.bf16.gmra.mxu0 %v487
        %v770 = vpop.f32.mrf.mxu0
        %v771 = vadd.f32 0.0, %v770
        %v772 = vpop.f32.mrf.mxu0
        %v773 = vpop.f32.mrf.mxu0
        %v774 = vadd.f32 0.0, %v773
        %v775 = vpop.f32.mrf.mxu0
        %776 = vmatprep.mubr.bf16.mxu0 0
        %777 = vmatmul.mubr.bf16.gmra.mxu0 %v490
        %v778 = vpop.f32.mrf.mxu0
        %v779 = vadd.f32 0.0, %v778
        %v780 = vpop.f32.mrf.mxu0
        %v781 = vpop.f32.mrf.mxu0
        %v782 = vadd.f32 0.0, %v781
        %v783 = vpop.f32.mrf.mxu0
        %784 = vmatprep.mubr.bf16.mxu0 0
        %785 = vmatmul.mubr.bf16.gmra.mxu0 %v493
        %v786 = vpop.f32.mrf.mxu0
        %v787 = vadd.f32 0.0, %v786
        %v788 = vpop.f32.mrf.mxu0
        %v789 = vpop.f32.mrf.mxu0
        %v790 = vadd.f32 0.0, %v789
        %v791 = vpop.f32.mrf.mxu0
        %792 = vmatprep.mubr.bf16.mxu0 0
        %793 = vmatmul.mubr.bf16.gmra.mxu0 %v496
        %v794 = vpop.f32.mrf.mxu0
        %v795 = vadd.f32 0.0, %v794
        %v796 = vpop.f32.mrf.mxu0
        %v797 = vpop.f32.mrf.mxu0
        %v798 = vadd.f32 0.0, %v797
        %v799 = vpop.f32.mrf.mxu0
        %800 = vdwg.mxu0
        %v801 = vmax.f32 %v719, %v771
        %v802 = vmax.f32 %v720, %v774
        %v803 = vmax.f32 %v721, %v779
        %v804 = vmax.f32 %v722, %v782
        %v805 = vmax.f32 %v723, %v787
        %v806 = vmax.f32 %v724, %v790
        %v807 = vmax.f32 %v725, %v795
        %v808 = vmax.f32 %v726, %v798
        %s809 = scalar_lea.vmem %s247, 32 [#allocation2]
        %v810 = vld [vmem:[%s809] sm:$0xf]
        %v811 = vld [vmem:[%s809 + $0x4] sm:$0xf]
        %v814 = vunpack.c.l.b16 %v810
        %v815 = vunpack.c.l.b16 %v811
        %v816 = vpack.c.b16 %v815, %v814
        %818 = vmatprep.subr.bf16.mxu0 0
        %819 = vmatpush1.bf16.msra.mxu0 0
        %820 = vmatprep.subr.bf16.mxu0 0
        %821 = vmatpush1.bf16.msra.mxu0 0
        %822 = vmatprep.subr.bf16.mxu0 0
        %823 = vmatpush1.bf16.msra.mxu0 0
        %824 = vmatprep.subr.bf16.mxu0 0
        %825 = vmatpush1.bf16.msra.mxu0 0
        %826 = vmatprep.subr.bf16.mxu0 0
        %827 = vmatpush1.bf16.msra.mxu0 0
        %828 = vmatprep.subr.bf16.mxu0 0
        %829 = vmatpush1.bf16.msra.mxu0 0
        %830 = vmatprep.subr.bf16.mxu0 0
        %831 = vmatpush1.bf16.msra.mxu0 0
        %832 = vmatprep.subr.bf16.mxu0 0
        %833 = vmatpush1.bf16.msra.mxu0 %v816
        %834 = vmatprep.subr.bf16.mxu0 0
        %835 = vmatpush2.bf16.msra.mxu0 0
        %836 = vmatprep.subr.bf16.mxu0 0
        %837 = vmatpush2.bf16.msra.mxu0 0
        %838 = vmatprep.subr.bf16.mxu0 0
        %839 = vmatpush2.bf16.msra.mxu0 0
        %840 = vmatprep.subr.bf16.mxu0 0
        %841 = vmatpush2.bf16.msra.mxu0 0
        %842 = vmatprep.subr.bf16.mxu0 0
        %843 = vmatpush2.bf16.msra.mxu0 0
        %844 = vmatprep.subr.bf16.mxu0 0
        %845 = vmatpush2.bf16.msra.mxu0 0
        %846 = vmatprep.subr.bf16.mxu0 0
        %847 = vmatpush2.bf16.msra.mxu0 0
        %848 = vmatprep.subr.bf16.mxu0 0
        %849 = vmatpush2.bf16.msra.mxu0 0
        %850 = vmatprep.mubr.bf16.mxu0 0
        %851 = vmatmul.mubr.bf16.gmra.mxu0 %v487
        %v852 = vpop.f32.mrf.mxu0
        %v853 = vadd.f32 0.0, %v852
        %v854 = vpop.f32.mrf.mxu0
        %v855 = vpop.f32.mrf.mxu0
        %v856 = vadd.f32 0.0, %v855
        %v857 = vpop.f32.mrf.mxu0
        %858 = vmatprep.mubr.bf16.mxu0 0
        %859 = vmatmul.mubr.bf16.gmra.mxu0 %v490
        %v860 = vpop.f32.mrf.mxu0
        %v861 = vadd.f32 0.0, %v860
        %v862 = vpop.f32.mrf.mxu0
        %v863 = vpop.f32.mrf.mxu0
        %v864 = vadd.f32 0.0, %v863
        %v865 = vpop.f32.mrf.mxu0
        %866 = vmatprep.mubr.bf16.mxu0 0
        %867 = vmatmul.mubr.bf16.gmra.mxu0 %v493
        %v868 = vpop.f32.mrf.mxu0
        %v869 = vadd.f32 0.0, %v868
        %v870 = vpop.f32.mrf.mxu0
        %v871 = vpop.f32.mrf.mxu0
        %v872 = vadd.f32 0.0, %v871
        %v873 = vpop.f32.mrf.mxu0
        %874 = vmatprep.mubr.bf16.mxu0 0
        %875 = vmatmul.mubr.bf16.gmra.mxu0 %v496
        %v876 = vpop.f32.mrf.mxu0
        %v877 = vadd.f32 0.0, %v876
        %v878 = vpop.f32.mrf.mxu0
        %v879 = vpop.f32.mrf.mxu0
        %v880 = vadd.f32 0.0, %v879
        %v881 = vpop.f32.mrf.mxu0
        %882 = vdwg.mxu0
        %v883 = vmax.f32 %v801, %v853
        %v884 = vmax.f32 %v802, %v856
        %v885 = vmax.f32 %v803, %v861
        %v886 = vmax.f32 %v804, %v864
        %v887 = vmax.f32 %v805, %v869
        %v888 = vmax.f32 %v806, %v872
        %v889 = vmax.f32 %v807, %v877
        %v890 = vmax.f32 %v808, %v880
        %s891 = scalar_lea.vmem %s247, 40 [#allocation2]
        %v892 = vld [vmem:[%s891] sm:$0xf]
        %v893 = vld [vmem:[%s891 + $0x4] sm:$0xf]
        %v896 = vunpack.c.l.b16 %v892
        %v897 = vunpack.c.l.b16 %v893
        %v898 = vpack.c.b16 %v897, %v896
        %900 = vmatprep.subr.bf16.mxu0 0
        %901 = vmatpush1.bf16.msra.mxu0 0
        %902 = vmatprep.subr.bf16.mxu0 0
        %903 = vmatpush1.bf16.msra.mxu0 0
        %904 = vmatprep.subr.bf16.mxu0 0
        %905 = vmatpush1.bf16.msra.mxu0 0
        %906 = vmatprep.subr.bf16.mxu0 0
        %907 = vmatpush1.bf16.msra.mxu0 0
        %908 = vmatprep.subr.bf16.mxu0 0
        %909 = vmatpush1.bf16.msra.mxu0 0
        %910 = vmatprep.subr.bf16.mxu0 0
        %911 = vmatpush1.bf16.msra.mxu0 0
        %912 = vmatprep.subr.bf16.mxu0 0
        %913 = vmatpush1.bf16.msra.mxu0 0
        %914 = vmatprep.subr.bf16.mxu0 0
        %915 = vmatpush1.bf16.msra.mxu0 %v898
        %916 = vmatprep.subr.bf16.mxu0 0
        %917 = vmatpush2.bf16.msra.mxu0 0
        %918 = vmatprep.subr.bf16.mxu0 0
        %919 = vmatpush2.bf16.msra.mxu0 0
        %920 = vmatprep.subr.bf16.mxu0 0
        %921 = vmatpush2.bf16.msra.mxu0 0
        %922 = vmatprep.subr.bf16.mxu0 0
        %923 = vmatpush2.bf16.msra.mxu0 0
        %924 = vmatprep.subr.bf16.mxu0 0
        %925 = vmatpush2.bf16.msra.mxu0 0
        %926 = vmatprep.subr.bf16.mxu0 0
        %927 = vmatpush2.bf16.msra.mxu0 0
        %928 = vmatprep.subr.bf16.mxu0 0
        %929 = vmatpush2.bf16.msra.mxu0 0
        %930 = vmatprep.subr.bf16.mxu0 0
        %931 = vmatpush2.bf16.msra.mxu0 0
        %932 = vmatprep.mubr.bf16.mxu0 0
        %933 = vmatmul.mubr.bf16.gmra.mxu0 %v487
        %v934 = vpop.f32.mrf.mxu0
        %v935 = vadd.f32 0.0, %v934
        %v936 = vpop.f32.mrf.mxu0
        %v937 = vpop.f32.mrf.mxu0
        %v938 = vadd.f32 0.0, %v937
        %v939 = vpop.f32.mrf.mxu0
        %940 = vmatprep.mubr.bf16.mxu0 0
        %941 = vmatmul.mubr.bf16.gmra.mxu0 %v490
        %v942 = vpop.f32.mrf.mxu0
        %v943 = vadd.f32 0.0, %v942
        %v944 = vpop.f32.mrf.mxu0
        %v945 = vpop.f32.mrf.mxu0
        %v946 = vadd.f32 0.0, %v945
        %v947 = vpop.f32.mrf.mxu0
        %948 = vmatprep.mubr.bf16.mxu0 0
        %949 = vmatmul.mubr.bf16.gmra.mxu0 %v493
        %v950 = vpop.f32.mrf.mxu0
        %v951 = vadd.f32 0.0, %v950
        %v952 = vpop.f32.mrf.mxu0
        %v953 = vpop.f32.mrf.mxu0
        %v954 = vadd.f32 0.0, %v953
        %v955 = vpop.f32.mrf.mxu0
        %956 = vmatprep.mubr.bf16.mxu0 0
        %957 = vmatmul.mubr.bf16.gmra.mxu0 %v496
        %v958 = vpop.f32.mrf.mxu0
        %v959 = vadd.f32 0.0, %v958
        %v960 = vpop.f32.mrf.mxu0
        %v961 = vpop.f32.mrf.mxu0
        %v962 = vadd.f32 0.0, %v961
        %v963 = vpop.f32.mrf.mxu0
        %964 = vdwg.mxu0
        %v965 = vmax.f32 %v883, %v935
        %v966 = vmax.f32 %v884, %v938
        %v967 = vmax.f32 %v885, %v943
        %v968 = vmax.f32 %v886, %v946
        %v969 = vmax.f32 %v887, %v951
        %v970 = vmax.f32 %v888, %v954
        %v971 = vmax.f32 %v889, %v959
        %v972 = vmax.f32 %v890, %v962
        %s973 = scalar_lea.vmem %s247, 48 [#allocation2]
        %v974 = vld [vmem:[%s973] sm:$0xf]
        %v975 = vld [vmem:[%s973 + $0x4] sm:$0xf]
        %v978 = vunpack.c.l.b16 %v974
        %v979 = vunpack.c.l.b16 %v975
        %v980 = vpack.c.b16 %v979, %v978
        %982 = vmatprep.subr.bf16.mxu0 0
        %983 = vmatpush1.bf16.msra.mxu0 0
        %984 = vmatprep.subr.bf16.mxu0 0
        %985 = vmatpush1.bf16.msra.mxu0 0
        %986 = vmatprep.subr.bf16.mxu0 0
        %987 = vmatpush1.bf16.msra.mxu0 0
        %988 = vmatprep.subr.bf16.mxu0 0
        %989 = vmatpush1.bf16.msra.mxu0 0
        %990 = vmatprep.subr.bf16.mxu0 0
        %991 = vmatpush1.bf16.msra.mxu0 0
        %992 = vmatprep.subr.bf16.mxu0 0
        %993 = vmatpush1.bf16.msra.mxu0 0
        %994 = vmatprep.subr.bf16.mxu0 0
        %995 = vmatpush1.bf16.msra.mxu0 0
        %996 = vmatprep.subr.bf16.mxu0 0
        %997 = vmatpush1.bf16.msra.mxu0 %v980
        %998 = vmatprep.subr.bf16.mxu0 0
        %999 = vmatpush2.bf16.msra.mxu0 0
        %1000 = vmatprep.subr.bf16.mxu0 0
        %1001 = vmatpush2.bf16.msra.mxu0 0
        %1002 = vmatprep.subr.bf16.mxu0 0
        %1003 = vmatpush2.bf16.msra.mxu0 0
        %1004 = vmatprep.subr.bf16.mxu0 0
        %1005 = vmatpush2.bf16.msra.mxu0 0
        %1006 = vmatprep.subr.bf16.mxu0 0
        %1007 = vmatpush2.bf16.msra.mxu0 0
        %1008 = vmatprep.subr.bf16.mxu0 0
        %1009 = vmatpush2.bf16.msra.mxu0 0
        %1010 = vmatprep.subr.bf16.mxu0 0
        %1011 = vmatpush2.bf16.msra.mxu0 0
        %1012 = vmatprep.subr.bf16.mxu0 0
        %1013 = vmatpush2.bf16.msra.mxu0 0
        %1014 = vmatprep.mubr.bf16.mxu0 0
        %1015 = vmatmul.mubr.bf16.gmra.mxu0 %v487
        %v1016 = vpop.f32.mrf.mxu0
        %v1017 = vadd.f32 0.0, %v1016
        %v1018 = vpop.f32.mrf.mxu0
        %v1019 = vpop.f32.mrf.mxu0
        %v1020 = vadd.f32 0.0, %v1019
        %v1021 = vpop.f32.mrf.mxu0
        %1022 = vmatprep.mubr.bf16.mxu0 0
        %1023 = vmatmul.mubr.bf16.gmra.mxu0 %v490
        %v1024 = vpop.f32.mrf.mxu0
        %v1025 = vadd.f32 0.0, %v1024
        %v1026 = vpop.f32.mrf.mxu0
        %v1027 = vpop.f32.mrf.mxu0
        %v1028 = vadd.f32 0.0, %v1027
        %v1029 = vpop.f32.mrf.mxu0
        %1030 = vmatprep.mubr.bf16.mxu0 0
        %1031 = vmatmul.mubr.bf16.gmra.mxu0 %v493
        %v1032 = vpop.f32.mrf.mxu0
        %v1033 = vadd.f32 0.0, %v1032
        %v1034 = vpop.f32.mrf.mxu0
        %v1035 = vpop.f32.mrf.mxu0
        %v1036 = vadd.f32 0.0, %v1035
        %v1037 = vpop.f32.mrf.mxu0
        %1038 = vmatprep.mubr.bf16.mxu0 0
        %1039 = vmatmul.mubr.bf16.gmra.mxu0 %v496
        %v1040 = vpop.f32.mrf.mxu0
        %v1041 = vadd.f32 0.0, %v1040
        %v1042 = vpop.f32.mrf.mxu0
        %v1043 = vpop.f32.mrf.mxu0
        %v1044 = vadd.f32 0.0, %v1043
        %v1045 = vpop.f32.mrf.mxu0
        %1046 = vdwg.mxu0
        %v1047 = vmax.f32 %v965, %v1017
        %v1048 = vmax.f32 %v966, %v1020
        %v1049 = vmax.f32 %v967, %v1025
        %v1050 = vmax.f32 %v968, %v1028
        %v1051 = vmax.f32 %v969, %v1033
        %v1052 = vmax.f32 %v970, %v1036
        %v1053 = vmax.f32 %v971, %v1041
        %v1054 = vmax.f32 %v972, %v1044
        %s1055 = scalar_lea.vmem %s247, 56 [#allocation2]
        %v1056 = vld [vmem:[%s1055] sm:$0xf]
        %v1057 = vld [vmem:[%s1055 + $0x4] sm:$0xf]
        %v1060 = vunpack.c.l.b16 %v1056
        %v1061 = vunpack.c.l.b16 %v1057
        %v1062 = vpack.c.b16 %v1061, %v1060
        %1064 = vmatprep.subr.bf16.mxu0 0
        %1065 = vmatpush1.bf16.msra.mxu0 0
        %1066 = vmatprep.subr.bf16.mxu0 0
        %1067 = vmatpush1.bf16.msra.mxu0 0
        %1068 = vmatprep.subr.bf16.mxu0 0
        %1069 = vmatpush1.bf16.msra.mxu0 0
        %1070 = vmatprep.subr.bf16.mxu0 0
        %1071 = vmatpush1.bf16.msra.mxu0 0
        %1072 = vmatprep.subr.bf16.mxu0 0
        %1073 = vmatpush1.bf16.msra.mxu0 0
        %1074 = vmatprep.subr.bf16.mxu0 0
        %1075 = vmatpush1.bf16.msra.mxu0 0
        %1076 = vmatprep.subr.bf16.mxu0 0
        %1077 = vmatpush1.bf16.msra.mxu0 0
        %1078 = vmatprep.subr.bf16.mxu0 0
        %1079 = vmatpush1.bf16.msra.mxu0 %v1062
        %1080 = vmatprep.subr.bf16.mxu0 0
        %1081 = vmatpush2.bf16.msra.mxu0 0
        %1082 = vmatprep.subr.bf16.mxu0 0
        %1083 = vmatpush2.bf16.msra.mxu0 0
        %1084 = vmatprep.subr.bf16.mxu0 0
        %1085 = vmatpush2.bf16.msra.mxu0 0
        %1086 = vmatprep.subr.bf16.mxu0 0
        %1087 = vmatpush2.bf16.msra.mxu0 0
        %1088 = vmatprep.subr.bf16.mxu0 0
        %1089 = vmatpush2.bf16.msra.mxu0 0
        %1090 = vmatprep.subr.bf16.mxu0 0
        %1091 = vmatpush2.bf16.msra.mxu0 0
        %1092 = vmatprep.subr.bf16.mxu0 0
        %1093 = vmatpush2.bf16.msra.mxu0 0
        %1094 = vmatprep.subr.bf16.mxu0 0
        %1095 = vmatpush2.bf16.msra.mxu0 0
        %1096 = vmatprep.mubr.bf16.mxu0 0
        %1097 = vmatmul.mubr.bf16.gmra.mxu0 %v487
        %v1098 = vpop.f32.mrf.mxu0
        %v1099 = vadd.f32 0.0, %v1098
        %v1100 = vpop.f32.mrf.mxu0
        %v1101 = vpop.f32.mrf.mxu0
        %v1102 = vadd.f32 0.0, %v1101
        %v1103 = vpop.f32.mrf.mxu0
        %1104 = vmatprep.mubr.bf16.mxu0 0
        %1105 = vmatmul.mubr.bf16.gmra.mxu0 %v490
        %v1106 = vpop.f32.mrf.mxu0
        %v1107 = vadd.f32 0.0, %v1106
        %v1108 = vpop.f32.mrf.mxu0
        %v1109 = vpop.f32.mrf.mxu0
        %v1110 = vadd.f32 0.0, %v1109
        %v1111 = vpop.f32.mrf.mxu0
        %1112 = vmatprep.mubr.bf16.mxu0 0
        %1113 = vmatmul.mubr.bf16.gmra.mxu0 %v493
        %v1114 = vpop.f32.mrf.mxu0
        %v1115 = vadd.f32 0.0, %v1114
        %v1116 = vpop.f32.mrf.mxu0
        %v1117 = vpop.f32.mrf.mxu0
        %v1118 = vadd.f32 0.0, %v1117
        %v1119 = vpop.f32.mrf.mxu0
        %1120 = vmatprep.mubr.bf16.mxu0 0
        %1121 = vmatmul.mubr.bf16.gmra.mxu0 %v496
        %v1122 = vpop.f32.mrf.mxu0
        %v1123 = vadd.f32 0.0, %v1122
        %v1124 = vpop.f32.mrf.mxu0
        %v1125 = vpop.f32.mrf.mxu0
        %v1126 = vadd.f32 0.0, %v1125
        %v1127 = vpop.f32.mrf.mxu0
        %1128 = vdwg.mxu0
        %v1129 = vmax.f32 %v1047, %v1099
        %v1130 = vmax.f32 %v1048, %v1102
        %v1131 = vmax.f32 %v1049, %v1107
        %v1132 = vmax.f32 %v1050, %v1110
        %v1133 = vmax.f32 %v1051, %v1115
        %v1134 = vmax.f32 %v1052, %v1118
        %v1135 = vmax.f32 %v1053, %v1123
        %v1136 = vmax.f32 %v1054, %v1126
        %s1137 = scalar_lea.vmem %s247, 64 [#allocation2]
        %v1138 = vld [vmem:[%s1137] sm:$0xf]
        %v1139 = vld [vmem:[%s1137 + $0x4] sm:$0xf]
        %v1142 = vunpack.c.l.b16 %v1138
        %v1143 = vunpack.c.l.b16 %v1139
        %v1144 = vpack.c.b16 %v1143, %v1142
        %1146 = vmatprep.subr.bf16.mxu0 0
        %1147 = vmatpush1.bf16.msra.mxu0 0
        %1148 = vmatprep.subr.bf16.mxu0 0
        %1149 = vmatpush1.bf16.msra.mxu0 0
        %1150 = vmatprep.subr.bf16.mxu0 0
        %1151 = vmatpush1.bf16.msra.mxu0 0
        %1152 = vmatprep.subr.bf16.mxu0 0
        %1153 = vmatpush1.bf16.msra.mxu0 0
        %1154 = vmatprep.subr.bf16.mxu0 0
        %1155 = vmatpush1.bf16.msra.mxu0 0
        %1156 = vmatprep.subr.bf16.mxu0 0
        %1157 = vmatpush1.bf16.msra.mxu0 0
        %1158 = vmatprep.subr.bf16.mxu0 0
        %1159 = vmatpush1.bf16.msra.mxu0 0
        %1160 = vmatprep.subr.bf16.mxu0 0
        %1161 = vmatpush1.bf16.msra.mxu0 %v1144
        %1162 = vmatprep.subr.bf16.mxu0 0
        %1163 = vmatpush2.bf16.msra.mxu0 0
        %1164 = vmatprep.subr.bf16.mxu0 0
        %1165 = vmatpush2.bf16.msra.mxu0 0
        %1166 = vmatprep.subr.bf16.mxu0 0
        %1167 = vmatpush2.bf16.msra.mxu0 0
        %1168 = vmatprep.subr.bf16.mxu0 0
        %1169 = vmatpush2.bf16.msra.mxu0 0
        %1170 = vmatprep.subr.bf16.mxu0 0
        %1171 = vmatpush2.bf16.msra.mxu0 0
        %1172 = vmatprep.subr.bf16.mxu0 0
        %1173 = vmatpush2.bf16.msra.mxu0 0
        %1174 = vmatprep.subr.bf16.mxu0 0
        %1175 = vmatpush2.bf16.msra.mxu0 0
        %1176 = vmatprep.subr.bf16.mxu0 0
        %1177 = vmatpush2.bf16.msra.mxu0 0
        %1178 = vmatprep.mubr.bf16.mxu0 0
        %1179 = vmatmul.mubr.bf16.gmra.mxu0 %v487
        %v1180 = vpop.f32.mrf.mxu0
        %v1181 = vadd.f32 0.0, %v1180
        %v1182 = vpop.f32.mrf.mxu0
        %v1183 = vpop.f32.mrf.mxu0
        %v1184 = vadd.f32 0.0, %v1183
        %v1185 = vpop.f32.mrf.mxu0
        %1186 = vmatprep.mubr.bf16.mxu0 0
        %1187 = vmatmul.mubr.bf16.gmra.mxu0 %v490
        %v1188 = vpop.f32.mrf.mxu0
        %v1189 = vadd.f32 0.0, %v1188
        %v1190 = vpop.f32.mrf.mxu0
        %v1191 = vpop.f32.mrf.mxu0
        %v1192 = vadd.f32 0.0, %v1191
        %v1193 = vpop.f32.mrf.mxu0
        %1194 = vmatprep.mubr.bf16.mxu0 0
        %1195 = vmatmul.mubr.bf16.gmra.mxu0 %v493
        %v1196 = vpop.f32.mrf.mxu0
        %v1197 = vadd.f32 0.0, %v1196
        %v1198 = vpop.f32.mrf.mxu0
        %v1199 = vpop.f32.mrf.mxu0
        %v1200 = vadd.f32 0.0, %v1199
        %v1201 = vpop.f32.mrf.mxu0
        %1202 = vmatprep.mubr.bf16.mxu0 0
        %1203 = vmatmul.mubr.bf16.gmra.mxu0 %v496
        %v1204 = vpop.f32.mrf.mxu0
        %v1205 = vadd.f32 0.0, %v1204
        %v1206 = vpop.f32.mrf.mxu0
        %v1207 = vpop.f32.mrf.mxu0
        %v1208 = vadd.f32 0.0, %v1207
        %v1209 = vpop.f32.mrf.mxu0
        %1210 = vdwg.mxu0
        %v1211 = vmax.f32 %v1129, %v1181
        %v1212 = vmax.f32 %v1130, %v1184
        %v1213 = vmax.f32 %v1131, %v1189
        %v1214 = vmax.f32 %v1132, %v1192
        %v1215 = vmax.f32 %v1133, %v1197
        %v1216 = vmax.f32 %v1134, %v1200
        %v1217 = vmax.f32 %v1135, %v1205
        %v1218 = vmax.f32 %v1136, %v1208
        %s1219 = scalar_lea.vmem %s247, 72 [#allocation2]
        %v1220 = vld [vmem:[%s1219] sm:$0xf]
        %v1221 = vld [vmem:[%s1219 + $0x4] sm:$0xf]
        %v1224 = vunpack.c.l.b16 %v1220
        %v1225 = vunpack.c.l.b16 %v1221
        %v1226 = vpack.c.b16 %v1225, %v1224
        %1228 = vmatprep.subr.bf16.mxu0 0
        %1229 = vmatpush1.bf16.msra.mxu0 0
        %1230 = vmatprep.subr.bf16.mxu0 0
        %1231 = vmatpush1.bf16.msra.mxu0 0
        %1232 = vmatprep.subr.bf16.mxu0 0
        %1233 = vmatpush1.bf16.msra.mxu0 0
        %1234 = vmatprep.subr.bf16.mxu0 0
        %1235 = vmatpush1.bf16.msra.mxu0 0
        %1236 = vmatprep.subr.bf16.mxu0 0
        %1237 = vmatpush1.bf16.msra.mxu0 0
        %1238 = vmatprep.subr.bf16.mxu0 0
        %1239 = vmatpush1.bf16.msra.mxu0 0
        %1240 = vmatprep.subr.bf16.mxu0 0
        %1241 = vmatpush1.bf16.msra.mxu0 0
        %1242 = vmatprep.subr.bf16.mxu0 0
        %1243 = vmatpush1.bf16.msra.mxu0 %v1226
        %1244 = vmatprep.subr.bf16.mxu0 0
        %1245 = vmatpush2.bf16.msra.mxu0 0
        %1246 = vmatprep.subr.bf16.mxu0 0
        %1247 = vmatpush2.bf16.msra.mxu0 0
        %1248 = vmatprep.subr.bf16.mxu0 0
        %1249 = vmatpush2.bf16.msra.mxu0 0
        %1250 = vmatprep.subr.bf16.mxu0 0
        %1251 = vmatpush2.bf16.msra.mxu0 0
        %1252 = vmatprep.subr.bf16.mxu0 0
        %1253 = vmatpush2.bf16.msra.mxu0 0
        %1254 = vmatprep.subr.bf16.mxu0 0
        %1255 = vmatpush2.bf16.msra.mxu0 0
        %1256 = vmatprep.subr.bf16.mxu0 0
        %1257 = vmatpush2.bf16.msra.mxu0 0
        %1258 = vmatprep.subr.bf16.mxu0 0
        %1259 = vmatpush2.bf16.msra.mxu0 0
        %1260 = vmatprep.mubr.bf16.mxu0 0
        %1261 = vmatmul.mubr.bf16.gmra.mxu0 %v487
        %v1262 = vpop.f32.mrf.mxu0
        %v1263 = vadd.f32 0.0, %v1262
        %v1264 = vpop.f32.mrf.mxu0
        %v1265 = vpop.f32.mrf.mxu0
        %v1266 = vadd.f32 0.0, %v1265
        %v1267 = vpop.f32.mrf.mxu0
        %1268 = vmatprep.mubr.bf16.mxu0 0
        %1269 = vmatmul.mubr.bf16.gmra.mxu0 %v490
        %v1270 = vpop.f32.mrf.mxu0
        %v1271 = vadd.f32 0.0, %v1270
        %v1272 = vpop.f32.mrf.mxu0
        %v1273 = vpop.f32.mrf.mxu0
        %v1274 = vadd.f32 0.0, %v1273
        %v1275 = vpop.f32.mrf.mxu0
        %1276 = vmatprep.mubr.bf16.mxu0 0
        %1277 = vmatmul.mubr.bf16.gmra.mxu0 %v493
        %v1278 = vpop.f32.mrf.mxu0
        %v1279 = vadd.f32 0.0, %v1278
        %v1280 = vpop.f32.mrf.mxu0
        %v1281 = vpop.f32.mrf.mxu0
        %v1282 = vadd.f32 0.0, %v1281
        %v1283 = vpop.f32.mrf.mxu0
        %1284 = vmatprep.mubr.bf16.mxu0 0
        %1285 = vmatmul.mubr.bf16.gmra.mxu0 %v496
        %v1286 = vpop.f32.mrf.mxu0
        %v1287 = vadd.f32 0.0, %v1286
        %v1288 = vpop.f32.mrf.mxu0
        %v1289 = vpop.f32.mrf.mxu0
        %v1290 = vadd.f32 0.0, %v1289
        %v1291 = vpop.f32.mrf.mxu0
        %1292 = vdwg.mxu0
        %v1293 = vmax.f32 %v1211, %v1263
        %v1294 = vmax.f32 %v1212, %v1266
        %v1295 = vmax.f32 %v1213, %v1271
        %v1296 = vmax.f32 %v1214, %v1274
        %v1297 = vmax.f32 %v1215, %v1279
        %v1298 = vmax.f32 %v1216, %v1282
        %v1299 = vmax.f32 %v1217, %v1287
        %v1300 = vmax.f32 %v1218, %v1290
        %s1301 = scalar_lea.vmem %s247, 80 [#allocation2]
        %v1302 = vld [vmem:[%s1301] sm:$0xf]
        %v1303 = vld [vmem:[%s1301 + $0x4] sm:$0xf]
        %v1306 = vunpack.c.l.b16 %v1302
        %v1307 = vunpack.c.l.b16 %v1303
        %v1308 = vpack.c.b16 %v1307, %v1306
        %1310 = vmatprep.subr.bf16.mxu0 0
        %1311 = vmatpush1.bf16.msra.mxu0 0
        %1312 = vmatprep.subr.bf16.mxu0 0
        %1313 = vmatpush1.bf16.msra.mxu0 0
        %1314 = vmatprep.subr.bf16.mxu0 0
        %1315 = vmatpush1.bf16.msra.mxu0 0
        %1316 = vmatprep.subr.bf16.mxu0 0
        %1317 = vmatpush1.bf16.msra.mxu0 0
        %1318 = vmatprep.subr.bf16.mxu0 0
        %1319 = vmatpush1.bf16.msra.mxu0 0
        %1320 = vmatprep.subr.bf16.mxu0 0
        %1321 = vmatpush1.bf16.msra.mxu0 0
        %1322 = vmatprep.subr.bf16.mxu0 0
        %1323 = vmatpush1.bf16.msra.mxu0 0
        %1324 = vmatprep.subr.bf16.mxu0 0
        %1325 = vmatpush1.bf16.msra.mxu0 %v1308
        %1326 = vmatprep.subr.bf16.mxu0 0
        %1327 = vmatpush2.bf16.msra.mxu0 0
        %1328 = vmatprep.subr.bf16.mxu0 0
        %1329 = vmatpush2.bf16.msra.mxu0 0
        %1330 = vmatprep.subr.bf16.mxu0 0
        %1331 = vmatpush2.bf16.msra.mxu0 0
        %1332 = vmatprep.subr.bf16.mxu0 0
        %1333 = vmatpush2.bf16.msra.mxu0 0
        %1334 = vmatprep.subr.bf16.mxu0 0
        %1335 = vmatpush2.bf16.msra.mxu0 0
        %1336 = vmatprep.subr.bf16.mxu0 0
        %1337 = vmatpush2.bf16.msra.mxu0 0
        %1338 = vmatprep.subr.bf16.mxu0 0
        %1339 = vmatpush2.bf16.msra.mxu0 0
        %1340 = vmatprep.subr.bf16.mxu0 0
        %1341 = vmatpush2.bf16.msra.mxu0 0
        %1342 = vmatprep.mubr.bf16.mxu0 0
        %1343 = vmatmul.mubr.bf16.gmra.mxu0 %v487
        %v1344 = vpop.f32.mrf.mxu0
        %v1345 = vadd.f32 0.0, %v1344
        %v1346 = vpop.f32.mrf.mxu0
        %v1347 = vpop.f32.mrf.mxu0
        %v1348 = vadd.f32 0.0, %v1347
        %v1349 = vpop.f32.mrf.mxu0
        %1350 = vmatprep.mubr.bf16.mxu0 0
        %1351 = vmatmul.mubr.bf16.gmra.mxu0 %v490
        %v1352 = vpop.f32.mrf.mxu0
        %v1353 = vadd.f32 0.0, %v1352
        %v1354 = vpop.f32.mrf.mxu0
        %v1355 = vpop.f32.mrf.mxu0
        %v1356 = vadd.f32 0.0, %v1355
        %v1357 = vpop.f32.mrf.mxu0
        %1358 = vmatprep.mubr.bf16.mxu0 0
        %1359 = vmatmul.mubr.bf16.gmra.mxu0 %v493
        %v1360 = vpop.f32.mrf.mxu0
        %v1361 = vadd.f32 0.0, %v1360
        %v1362 = vpop.f32.mrf.mxu0
        %v1363 = vpop.f32.mrf.mxu0
        %v1364 = vadd.f32 0.0, %v1363
        %v1365 = vpop.f32.mrf.mxu0
        %1366 = vmatprep.mubr.bf16.mxu0 0
        %1367 = vmatmul.mubr.bf16.gmra.mxu0 %v496
        %v1368 = vpop.f32.mrf.mxu0
        %v1369 = vadd.f32 0.0, %v1368
        %v1370 = vpop.f32.mrf.mxu0
        %v1371 = vpop.f32.mrf.mxu0
        %v1372 = vadd.f32 0.0, %v1371
        %v1373 = vpop.f32.mrf.mxu0
        %1374 = vdwg.mxu0
        %v1375 = vmax.f32 %v1293, %v1345
        %v1376 = vmax.f32 %v1294, %v1348
        %v1377 = vmax.f32 %v1295, %v1353
        %v1378 = vmax.f32 %v1296, %v1356
        %v1379 = vmax.f32 %v1297, %v1361
        %v1380 = vmax.f32 %v1298, %v1364
        %v1381 = vmax.f32 %v1299, %v1369
        %v1382 = vmax.f32 %v1300, %v1372
        %s1383 = scalar_lea.vmem %s247, 88 [#allocation2]
        %v1384 = vld [vmem:[%s1383] sm:$0xf]
        %v1385 = vld [vmem:[%s1383 + $0x4] sm:$0xf]
        %v1388 = vunpack.c.l.b16 %v1384
        %v1389 = vunpack.c.l.b16 %v1385
        %v1390 = vpack.c.b16 %v1389, %v1388
        %1392 = vmatprep.subr.bf16.mxu0 0
        %1393 = vmatpush1.bf16.msra.mxu0 0
        %1394 = vmatprep.subr.bf16.mxu0 0
        %1395 = vmatpush1.bf16.msra.mxu0 0
        %1396 = vmatprep.subr.bf16.mxu0 0
        %1397 = vmatpush1.bf16.msra.mxu0 0
        %1398 = vmatprep.subr.bf16.mxu0 0
        %1399 = vmatpush1.bf16.msra.mxu0 0
        %1400 = vmatprep.subr.bf16.mxu0 0
        %1401 = vmatpush1.bf16.msra.mxu0 0
        %1402 = vmatprep.subr.bf16.mxu0 0
        %1403 = vmatpush1.bf16.msra.mxu0 0
        %1404 = vmatprep.subr.bf16.mxu0 0
        %1405 = vmatpush1.bf16.msra.mxu0 0
        %1406 = vmatprep.subr.bf16.mxu0 0
        %1407 = vmatpush1.bf16.msra.mxu0 %v1390
        %1408 = vmatprep.subr.bf16.mxu0 0
        %1409 = vmatpush2.bf16.msra.mxu0 0
        %1410 = vmatprep.subr.bf16.mxu0 0
        %1411 = vmatpush2.bf16.msra.mxu0 0
        %1412 = vmatprep.subr.bf16.mxu0 0
        %1413 = vmatpush2.bf16.msra.mxu0 0
        %1414 = vmatprep.subr.bf16.mxu0 0
        %1415 = vmatpush2.bf16.msra.mxu0 0
        %1416 = vmatprep.subr.bf16.mxu0 0
        %1417 = vmatpush2.bf16.msra.mxu0 0
        %1418 = vmatprep.subr.bf16.mxu0 0
        %1419 = vmatpush2.bf16.msra.mxu0 0
        %1420 = vmatprep.subr.bf16.mxu0 0
        %1421 = vmatpush2.bf16.msra.mxu0 0
        %1422 = vmatprep.subr.bf16.mxu0 0
        %1423 = vmatpush2.bf16.msra.mxu0 0
        %1424 = vmatprep.mubr.bf16.mxu0 0
        %1425 = vmatmul.mubr.bf16.gmra.mxu0 %v487
        %v1426 = vpop.f32.mrf.mxu0
        %v1427 = vadd.f32 0.0, %v1426
        %v1428 = vpop.f32.mrf.mxu0
        %v1429 = vpop.f32.mrf.mxu0
        %v1430 = vadd.f32 0.0, %v1429
        %v1431 = vpop.f32.mrf.mxu0
        %1432 = vmatprep.mubr.bf16.mxu0 0
        %1433 = vmatmul.mubr.bf16.gmra.mxu0 %v490
        %v1434 = vpop.f32.mrf.mxu0
        %v1435 = vadd.f32 0.0, %v1434
        %v1436 = vpop.f32.mrf.mxu0
        %v1437 = vpop.f32.mrf.mxu0
        %v1438 = vadd.f32 0.0, %v1437
        %v1439 = vpop.f32.mrf.mxu0
        %1440 = vmatprep.mubr.bf16.mxu0 0
        %1441 = vmatmul.mubr.bf16.gmra.mxu0 %v493
        %v1442 = vpop.f32.mrf.mxu0
        %v1443 = vadd.f32 0.0, %v1442
        %v1444 = vpop.f32.mrf.mxu0
        %v1445 = vpop.f32.mrf.mxu0
        %v1446 = vadd.f32 0.0, %v1445
        %v1447 = vpop.f32.mrf.mxu0
        %1448 = vmatprep.mubr.bf16.mxu0 0
        %1449 = vmatmul.mubr.bf16.gmra.mxu0 %v496
        %v1450 = vpop.f32.mrf.mxu0
        %v1451 = vadd.f32 0.0, %v1450
        %v1452 = vpop.f32.mrf.mxu0
        %v1453 = vpop.f32.mrf.mxu0
        %v1454 = vadd.f32 0.0, %v1453
        %v1455 = vpop.f32.mrf.mxu0
        %1456 = vdwg.mxu0
        %v1457 = vmax.f32 %v1375, %v1427
        %v1458 = vmax.f32 %v1376, %v1430
        %v1459 = vmax.f32 %v1377, %v1435
        %v1460 = vmax.f32 %v1378, %v1438
        %v1461 = vmax.f32 %v1379, %v1443
        %v1462 = vmax.f32 %v1380, %v1446
        %v1463 = vmax.f32 %v1381, %v1451
        %v1464 = vmax.f32 %v1382, %v1454
        %s1465 = scalar_lea.vmem %s247, 96 [#allocation2]
        %v1466 = vld [vmem:[%s1465] sm:$0xf]
        %v1467 = vld [vmem:[%s1465 + $0x4] sm:$0xf]
        %v1470 = vunpack.c.l.b16 %v1466
        %v1471 = vunpack.c.l.b16 %v1467
        %v1472 = vpack.c.b16 %v1471, %v1470
        %1474 = vmatprep.subr.bf16.mxu0 0
        %1475 = vmatpush1.bf16.msra.mxu0 0
        %1476 = vmatprep.subr.bf16.mxu0 0
        %1477 = vmatpush1.bf16.msra.mxu0 0
        %1478 = vmatprep.subr.bf16.mxu0 0
        %1479 = vmatpush1.bf16.msra.mxu0 0
        %1480 = vmatprep.subr.bf16.mxu0 0
        %1481 = vmatpush1.bf16.msra.mxu0 0
        %1482 = vmatprep.subr.bf16.mxu0 0
        %1483 = vmatpush1.bf16.msra.mxu0 0
        %1484 = vmatprep.subr.bf16.mxu0 0
        %1485 = vmatpush1.bf16.msra.mxu0 0
        %1486 = vmatprep.subr.bf16.mxu0 0
        %1487 = vmatpush1.bf16.msra.mxu0 0
        %1488 = vmatprep.subr.bf16.mxu0 0
        %1489 = vmatpush1.bf16.msra.mxu0 %v1472
        %1490 = vmatprep.subr.bf16.mxu0 0
        %1491 = vmatpush2.bf16.msra.mxu0 0
        %1492 = vmatprep.subr.bf16.mxu0 0
        %1493 = vmatpush2.bf16.msra.mxu0 0
        %1494 = vmatprep.subr.bf16.mxu0 0
        %1495 = vmatpush2.bf16.msra.mxu0 0
        %1496 = vmatprep.subr.bf16.mxu0 0
        %1497 = vmatpush2.bf16.msra.mxu0 0
        %1498 = vmatprep.subr.bf16.mxu0 0
        %1499 = vmatpush2.bf16.msra.mxu0 0
        %1500 = vmatprep.subr.bf16.mxu0 0
        %1501 = vmatpush2.bf16.msra.mxu0 0
        %1502 = vmatprep.subr.bf16.mxu0 0
        %1503 = vmatpush2.bf16.msra.mxu0 0
        %1504 = vmatprep.subr.bf16.mxu0 0
        %1505 = vmatpush2.bf16.msra.mxu0 0
        %1506 = vmatprep.mubr.bf16.mxu0 0
        %1507 = vmatmul.mubr.bf16.gmra.mxu0 %v487
        %v1508 = vpop.f32.mrf.mxu0
        %v1509 = vadd.f32 0.0, %v1508
        %v1510 = vpop.f32.mrf.mxu0
        %v1511 = vpop.f32.mrf.mxu0
        %v1512 = vadd.f32 0.0, %v1511
        %v1513 = vpop.f32.mrf.mxu0
        %1514 = vmatprep.mubr.bf16.mxu0 0
        %1515 = vmatmul.mubr.bf16.gmra.mxu0 %v490
        %v1516 = vpop.f32.mrf.mxu0
        %v1517 = vadd.f32 0.0, %v1516
        %v1518 = vpop.f32.mrf.mxu0
        %v1519 = vpop.f32.mrf.mxu0
        %v1520 = vadd.f32 0.0, %v1519
        %v1521 = vpop.f32.mrf.mxu0
        %1522 = vmatprep.mubr.bf16.mxu0 0
        %1523 = vmatmul.mubr.bf16.gmra.mxu0 %v493
        %v1524 = vpop.f32.mrf.mxu0
        %v1525 = vadd.f32 0.0, %v1524
        %v1526 = vpop.f32.mrf.mxu0
        %v1527 = vpop.f32.mrf.mxu0
        %v1528 = vadd.f32 0.0, %v1527
        %v1529 = vpop.f32.mrf.mxu0
        %1530 = vmatprep.mubr.bf16.mxu0 0
        %1531 = vmatmul.mubr.bf16.gmra.mxu0 %v496
        %v1532 = vpop.f32.mrf.mxu0
        %v1533 = vadd.f32 0.0, %v1532
        %v1534 = vpop.f32.mrf.mxu0
        %v1535 = vpop.f32.mrf.mxu0
        %v1536 = vadd.f32 0.0, %v1535
        %v1537 = vpop.f32.mrf.mxu0
        %1538 = vdwg.mxu0
        %v1539 = vmax.f32 %v1457, %v1509
        %v1540 = vmax.f32 %v1458, %v1512
        %v1541 = vmax.f32 %v1459, %v1517
        %v1542 = vmax.f32 %v1460, %v1520
        %v1543 = vmax.f32 %v1461, %v1525
        %v1544 = vmax.f32 %v1462, %v1528
        %v1545 = vmax.f32 %v1463, %v1533
        %v1546 = vmax.f32 %v1464, %v1536
        %s1547 = scalar_lea.vmem %s247, 104 [#allocation2]
        %v1548 = vld [vmem:[%s1547] sm:$0xf]
        %v1549 = vld [vmem:[%s1547 + $0x4] sm:$0xf]
        %v1552 = vunpack.c.l.b16 %v1548
        %v1553 = vunpack.c.l.b16 %v1549
        %v1554 = vpack.c.b16 %v1553, %v1552
        %1556 = vmatprep.subr.bf16.mxu0 0
        %1557 = vmatpush1.bf16.msra.mxu0 0
        %1558 = vmatprep.subr.bf16.mxu0 0
        %1559 = vmatpush1.bf16.msra.mxu0 0
        %1560 = vmatprep.subr.bf16.mxu0 0
        %1561 = vmatpush1.bf16.msra.mxu0 0
        %1562 = vmatprep.subr.bf16.mxu0 0
        %1563 = vmatpush1.bf16.msra.mxu0 0
        %1564 = vmatprep.subr.bf16.mxu0 0
        %1565 = vmatpush1.bf16.msra.mxu0 0
        %1566 = vmatprep.subr.bf16.mxu0 0
        %1567 = vmatpush1.bf16.msra.mxu0 0
        %1568 = vmatprep.subr.bf16.mxu0 0
        %1569 = vmatpush1.bf16.msra.mxu0 0
        %1570 = vmatprep.subr.bf16.mxu0 0
        %1571 = vmatpush1.bf16.msra.mxu0 %v1554
        %1572 = vmatprep.subr.bf16.mxu0 0
        %1573 = vmatpush2.bf16.msra.mxu0 0
        %1574 = vmatprep.subr.bf16.mxu0 0
        %1575 = vmatpush2.bf16.msra.mxu0 0
        %1576 = vmatprep.subr.bf16.mxu0 0
        %1577 = vmatpush2.bf16.msra.mxu0 0
        %1578 = vmatprep.subr.bf16.mxu0 0
        %1579 = vmatpush2.bf16.msra.mxu0 0
        %1580 = vmatprep.subr.bf16.mxu0 0
        %1581 = vmatpush2.bf16.msra.mxu0 0
        %1582 = vmatprep.subr.bf16.mxu0 0
        %1583 = vmatpush2.bf16.msra.mxu0 0
        %1584 = vmatprep.subr.bf16.mxu0 0
        %1585 = vmatpush2.bf16.msra.mxu0 0
        %1586 = vmatprep.subr.bf16.mxu0 0
        %1587 = vmatpush2.bf16.msra.mxu0 0
        %1588 = vmatprep.mubr.bf16.mxu0 0
        %1589 = vmatmul.mubr.bf16.gmra.mxu0 %v487
        %v1590 = vpop.f32.mrf.mxu0
        %v1591 = vadd.f32 0.0, %v1590
        %v1592 = vpop.f32.mrf.mxu0
        %v1593 = vpop.f32.mrf.mxu0
        %v1594 = vadd.f32 0.0, %v1593
        %v1595 = vpop.f32.mrf.mxu0
        %1596 = vmatprep.mubr.bf16.mxu0 0
        %1597 = vmatmul.mubr.bf16.gmra.mxu0 %v490
        %v1598 = vpop.f32.mrf.mxu0
        %v1599 = vadd.f32 0.0, %v1598
        %v1600 = vpop.f32.mrf.mxu0
        %v1601 = vpop.f32.mrf.mxu0
        %v1602 = vadd.f32 0.0, %v1601
        %v1603 = vpop.f32.mrf.mxu0
        %1604 = vmatprep.mubr.bf16.mxu0 0
        %1605 = vmatmul.mubr.bf16.gmra.mxu0 %v493
        %v1606 = vpop.f32.mrf.mxu0
        %v1607 = vadd.f32 0.0, %v1606
        %v1608 = vpop.f32.mrf.mxu0
        %v1609 = vpop.f32.mrf.mxu0
        %v1610 = vadd.f32 0.0, %v1609
        %v1611 = vpop.f32.mrf.mxu0
        %1612 = vmatprep.mubr.bf16.mxu0 0
        %1613 = vmatmul.mubr.bf16.gmra.mxu0 %v496
        %v1614 = vpop.f32.mrf.mxu0
        %v1615 = vadd.f32 0.0, %v1614
        %v1616 = vpop.f32.mrf.mxu0
        %v1617 = vpop.f32.mrf.mxu0
        %v1618 = vadd.f32 0.0, %v1617
        %v1619 = vpop.f32.mrf.mxu0
        %1620 = vdwg.mxu0
        %v1621 = vmax.f32 %v1539, %v1591
        %v1622 = vmax.f32 %v1540, %v1594
        %v1623 = vmax.f32 %v1541, %v1599
        %v1624 = vmax.f32 %v1542, %v1602
        %v1625 = vmax.f32 %v1543, %v1607
        %v1626 = vmax.f32 %v1544, %v1610
        %v1627 = vmax.f32 %v1545, %v1615
        %v1628 = vmax.f32 %v1546, %v1618
        %s1629 = scalar_lea.vmem %s247, 112 [#allocation2]
        %v1630 = vld [vmem:[%s1629] sm:$0xf]
        %v1631 = vld [vmem:[%s1629 + $0x4] sm:$0xf]
        %v1634 = vunpack.c.l.b16 %v1630
        %v1635 = vunpack.c.l.b16 %v1631
        %v1636 = vpack.c.b16 %v1635, %v1634
        %1638 = vmatprep.subr.bf16.mxu0 0
        %1639 = vmatpush1.bf16.msra.mxu0 0
        %1640 = vmatprep.subr.bf16.mxu0 0
        %1641 = vmatpush1.bf16.msra.mxu0 0
        %1642 = vmatprep.subr.bf16.mxu0 0
        %1643 = vmatpush1.bf16.msra.mxu0 0
        %1644 = vmatprep.subr.bf16.mxu0 0
        %1645 = vmatpush1.bf16.msra.mxu0 0
        %1646 = vmatprep.subr.bf16.mxu0 0
        %1647 = vmatpush1.bf16.msra.mxu0 0
        %1648 = vmatprep.subr.bf16.mxu0 0
        %1649 = vmatpush1.bf16.msra.mxu0 0
        %1650 = vmatprep.subr.bf16.mxu0 0
        %1651 = vmatpush1.bf16.msra.mxu0 0
        %1652 = vmatprep.subr.bf16.mxu0 0
        %1653 = vmatpush1.bf16.msra.mxu0 %v1636
        %1654 = vmatprep.subr.bf16.mxu0 0
        %1655 = vmatpush2.bf16.msra.mxu0 0
        %1656 = vmatprep.subr.bf16.mxu0 0
        %1657 = vmatpush2.bf16.msra.mxu0 0
        %1658 = vmatprep.subr.bf16.mxu0 0
        %1659 = vmatpush2.bf16.msra.mxu0 0
        %1660 = vmatprep.subr.bf16.mxu0 0
        %1661 = vmatpush2.bf16.msra.mxu0 0
        %1662 = vmatprep.subr.bf16.mxu0 0
        %1663 = vmatpush2.bf16.msra.mxu0 0
        %1664 = vmatprep.subr.bf16.mxu0 0
        %1665 = vmatpush2.bf16.msra.mxu0 0
        %1666 = vmatprep.subr.bf16.mxu0 0
        %1667 = vmatpush2.bf16.msra.mxu0 0
        %1668 = vmatprep.subr.bf16.mxu0 0
        %1669 = vmatpush2.bf16.msra.mxu0 0
        %1670 = vmatprep.mubr.bf16.mxu0 0
        %1671 = vmatmul.mubr.bf16.gmra.mxu0 %v487
        %v1672 = vpop.f32.mrf.mxu0
        %v1673 = vadd.f32 0.0, %v1672
        %v1674 = vpop.f32.mrf.mxu0
        %v1675 = vpop.f32.mrf.mxu0
        %v1676 = vadd.f32 0.0, %v1675
        %v1677 = vpop.f32.mrf.mxu0
        %1678 = vmatprep.mubr.bf16.mxu0 0
        %1679 = vmatmul.mubr.bf16.gmra.mxu0 %v490
        %v1680 = vpop.f32.mrf.mxu0
        %v1681 = vadd.f32 0.0, %v1680
        %v1682 = vpop.f32.mrf.mxu0
        %v1683 = vpop.f32.mrf.mxu0
        %v1684 = vadd.f32 0.0, %v1683
        %v1685 = vpop.f32.mrf.mxu0
        %1686 = vmatprep.mubr.bf16.mxu0 0
        %1687 = vmatmul.mubr.bf16.gmra.mxu0 %v493
        %v1688 = vpop.f32.mrf.mxu0
        %v1689 = vadd.f32 0.0, %v1688
        %v1690 = vpop.f32.mrf.mxu0
        %v1691 = vpop.f32.mrf.mxu0
        %v1692 = vadd.f32 0.0, %v1691
        %v1693 = vpop.f32.mrf.mxu0
        %1694 = vmatprep.mubr.bf16.mxu0 0
        %1695 = vmatmul.mubr.bf16.gmra.mxu0 %v496
        %v1696 = vpop.f32.mrf.mxu0
        %v1697 = vadd.f32 0.0, %v1696
        %v1698 = vpop.f32.mrf.mxu0
        %v1699 = vpop.f32.mrf.mxu0
        %v1700 = vadd.f32 0.0, %v1699
        %v1701 = vpop.f32.mrf.mxu0
        %1702 = vdwg.mxu0
        %v1703 = vmax.f32 %v1621, %v1673
        %v1704 = vmax.f32 %v1622, %v1676
        %v1705 = vmax.f32 %v1623, %v1681
        %v1706 = vmax.f32 %v1624, %v1684
        %v1707 = vmax.f32 %v1625, %v1689
        %v1708 = vmax.f32 %v1626, %v1692
        %v1709 = vmax.f32 %v1627, %v1697
        %v1710 = vmax.f32 %v1628, %v1700
        %s1711 = scalar_lea.vmem %s247, 120 [#allocation2]
        %v1712 = vld [vmem:[%s1711] sm:$0xf]
        %v1713 = vld [vmem:[%s1711 + $0x4] sm:$0xf]
        %v1716 = vunpack.c.l.b16 %v1712
        %v1717 = vunpack.c.l.b16 %v1713
        %v1718 = vpack.c.b16 %v1717, %v1716
        %1720 = vmatprep.subr.bf16.mxu0 0
        %1721 = vmatpush1.bf16.msra.mxu0 0
        %1722 = vmatprep.subr.bf16.mxu0 0
        %1723 = vmatpush1.bf16.msra.mxu0 0
        %1724 = vmatprep.subr.bf16.mxu0 0
        %1725 = vmatpush1.bf16.msra.mxu0 0
        %1726 = vmatprep.subr.bf16.mxu0 0
        %1727 = vmatpush1.bf16.msra.mxu0 0
        %1728 = vmatprep.subr.bf16.mxu0 0
        %1729 = vmatpush1.bf16.msra.mxu0 0
        %1730 = vmatprep.subr.bf16.mxu0 0
        %1731 = vmatpush1.bf16.msra.mxu0 0
        %1732 = vmatprep.subr.bf16.mxu0 0
        %1733 = vmatpush1.bf16.msra.mxu0 0
        %1734 = vmatprep.subr.bf16.mxu0 0
        %1735 = vmatpush1.bf16.msra.mxu0 %v1718
        %1736 = vmatprep.subr.bf16.mxu0 0
        %1737 = vmatpush2.bf16.msra.mxu0 0
        %1738 = vmatprep.subr.bf16.mxu0 0
        %1739 = vmatpush2.bf16.msra.mxu0 0
        %1740 = vmatprep.subr.bf16.mxu0 0
        %1741 = vmatpush2.bf16.msra.mxu0 0
        %1742 = vmatprep.subr.bf16.mxu0 0
        %1743 = vmatpush2.bf16.msra.mxu0 0
        %1744 = vmatprep.subr.bf16.mxu0 0
        %1745 = vmatpush2.bf16.msra.mxu0 0
        %1746 = vmatprep.subr.bf16.mxu0 0
        %1747 = vmatpush2.bf16.msra.mxu0 0
        %1748 = vmatprep.subr.bf16.mxu0 0
        %1749 = vmatpush2.bf16.msra.mxu0 0
        %1750 = vmatprep.subr.bf16.mxu0 0
        %1751 = vmatpush2.bf16.msra.mxu0 0
        %1752 = vmatprep.mubr.bf16.mxu0 0
        %1753 = vmatmul.mubr.bf16.gmra.mxu0 %v487
        %v1754 = vpop.f32.mrf.mxu0
        %v1755 = vadd.f32 0.0, %v1754
        %v1756 = vpop.f32.mrf.mxu0
        %v1757 = vpop.f32.mrf.mxu0
        %v1758 = vadd.f32 0.0, %v1757
        %v1759 = vpop.f32.mrf.mxu0
        %1760 = vmatprep.mubr.bf16.mxu0 0
        %1761 = vmatmul.mubr.bf16.gmra.mxu0 %v490
        %v1762 = vpop.f32.mrf.mxu0
        %v1763 = vadd.f32 0.0, %v1762
        %v1764 = vpop.f32.mrf.mxu0
        %v1765 = vpop.f32.mrf.mxu0
        %v1766 = vadd.f32 0.0, %v1765
        %v1767 = vpop.f32.mrf.mxu0
        %1768 = vmatprep.mubr.bf16.mxu0 0
        %1769 = vmatmul.mubr.bf16.gmra.mxu0 %v493
        %v1770 = vpop.f32.mrf.mxu0
        %v1771 = vadd.f32 0.0, %v1770
        %v1772 = vpop.f32.mrf.mxu0
        %v1773 = vpop.f32.mrf.mxu0
        %v1774 = vadd.f32 0.0, %v1773
        %v1775 = vpop.f32.mrf.mxu0
        %1776 = vmatprep.mubr.bf16.mxu0 0
        %1777 = vmatmul.mubr.bf16.gmra.mxu0 %v496
        %v1778 = vpop.f32.mrf.mxu0
        %v1779 = vadd.f32 0.0, %v1778
        %v1780 = vpop.f32.mrf.mxu0
        %v1781 = vpop.f32.mrf.mxu0
        %v1782 = vadd.f32 0.0, %v1781
        %v1783 = vpop.f32.mrf.mxu0
        %1784 = vdwg.mxu0
        %v1785 = vmax.f32 %v1703, %v1755
        %v1786 = vmax.f32 %v1704, %v1758
        %v1787 = vmax.f32 %v1705, %v1763
        %v1788 = vmax.f32 %v1706, %v1766
        %v1789 = vmax.f32 %v1707, %v1771
        %v1790 = vmax.f32 %v1708, %v1774
        %v1791 = vmax.f32 %v1709, %v1779
        %v1792 = vmax.f32 %v1710, %v1782
        %v1793 = vadd.f32 %v1785, %v427
        %v1794 = vadd.f32 %v1786, %v430
        %v1795 = vadd.f32 %v1787, %v435
        %v1796 = vadd.f32 %v1788, %v438
        %v1797 = vadd.f32 %v1789, %v443
        %v1798 = vadd.f32 %v1790, %v446
        %v1799 = vadd.f32 %v1791, %v451
        %v1800 = vadd.f32 %v1792, %v454
        %v1801 = vmul.f32 %v1793, 0.2
        %v1802 = vmul.f32 %v1794, 0.2
        %v1803 = vmul.f32 %v1795, 0.2
        %v1804 = vmul.f32 %v1796, 0.2
        %v1805 = vmul.f32 %v1797, 0.2
        %v1806 = vmul.f32 %v1798, 0.2
        %v1807 = vmul.f32 %v1799, 0.2
        %v1808 = vmul.f32 %v1800, 0.2
        %v1809 = vmax.f32 %v1793, %v1801
        %v1810 = vmax.f32 %v1794, %v1802
        %v1811 = vmax.f32 %v1795, %v1803
        %v1812 = vmax.f32 %v1796, %v1804
        %v1813 = vmax.f32 %v1797, %v1805
        %v1814 = vmax.f32 %v1798, %v1806
        %v1815 = vmax.f32 %v1799, %v1807
        %v1816 = vmax.f32 %v1800, %v1808
        %1817 = vst [vmem:[%s280] sm:$0xff] %v1809
        %1818 = vst [vmem:[%s280 + $0x8] sm:$0xff] %v1810
        %1819 = vst [vmem:[%s280 + $0x10] sm:$0xff] %v1811
        %1820 = vst [vmem:[%s280 + $0x18] sm:$0xff] %v1812
        %1821 = vst [vmem:[%s280 + $0x20] sm:$0xff] %v1813
        %1822 = vst [vmem:[%s280 + $0x28] sm:$0xff] %v1814
        %1823 = vst [vmem:[%s280 + $0x30] sm:$0xff] %v1815
        %1824 = vst [vmem:[%s280 + $0x38] sm:$0xff] %v1816
        %s1825 = sand.u32 %s163, 1
        %s1826 = scalar_lea.sflag [#allocation4], %s1825
        %s1827 = sand.u32 %s163, 1
        %s1828 = smul.addr %s1827, 64
        %s1829 = scalar_lea.vmem [#allocation5], %s1828
        // Predicated region
        $region45: #{tpu_custom_call.1} parent=39 // pred_check
          %p1830 = pneg %p173
        $region46: #{tpu_custom_call.1} parent=39 // pred_check_branch
          %1832 = sbr.rel (%p1830) target = $region48
        $region47: #{tpu_custom_call.1} parent=39 // pred_region
          %s1834 = ssub.s32 1024, 1024
          %1835 = vsyncadd %s1826, %s1834
          %s1836 = smul.addr %s26, 8
          %s1837 = sadd.s32 %s27, %s1836
          %s1838 = smul.addr %s1837, 128
          %s1839 = scalar_lea.hbm %s5, %s1838
          %s1840 = sshll.u32 %s1829, 4
          %s1841 = int_to_ptr.vmem [resolvable:$true] %s1840
          %1846 = dma.vmem_to_hbm [thread:$0]  %s1841, 1024, %s1839, %s1826, 128, 128, 8
        $region48: #{tpu_custom_call.1} parent=39 // pred_fallthru
          _
      $region40: #{tpu_custom_call.1} parent=5 // pred_fallthru
        _
      %p1847 = scmp.le.s32.totalorder 2, %s17
      // Predicated region
      $region49: #{tpu_custom_call.1} parent=5 // pred_check
        %p1848 = pneg %p1847
      $region50: #{tpu_custom_call.1} parent=5 // pred_check_branch
        %1850 = sbr.rel (%p1848) target = $region52
      $region51: #{tpu_custom_call.1} parent=5 // pred_region
        %s1851 = ssub.s32 %s17, 2
        // Predicated region
        $region53: #{tpu_custom_call.1} parent=51 // pred_check
          %p1852 = pneg %p179
        $region54: #{tpu_custom_call.1} parent=51 // pred_check_branch
          %1854 = sbr.rel (%p1852) target = $region56
        $region55: #{tpu_custom_call.1} parent=51 // pred_region
          %s1855 = sand.u32 %s164, 1
          %s1856 = scalar_lea.sflag [#allocation4], %s1855
          %s1857 = sand.u32 %s164, 1
          %s1858 = smul.addr %s1857, 64
          %s1859 = scalar_lea.vmem [#allocation5], %s1858
          %1860 = dma.done %s1856, 1024
        $region56: #{tpu_custom_call.1} parent=51 // pred_fallthru
          _
      $region52: #{tpu_custom_call.1} parent=5 // pred_fallthru
        _
    $region6: #{tpu_custom_call.1} parent=1 // loop_footer
      %s21 = sadd.s32 1, %s17
    $region7: #{tpu_custom_call.1} parent=1 // loop_footer_branch
      %16 = sbr.rel target = $region3
    $region8: #{tpu_custom_call.1} parent=1 // loop_exit
      _
    %1861 = vsyncpa [#allocation3], 1
    %s1862 = scalar_lea.sflag [#allocation3], 1
    %1863 = vsyncpa %s1862, 1
    %1864 = vsyncpa [#allocation4], 1
    %s1865 = scalar_lea.sflag [#allocation4], 1
    %1866 = vsyncpa %s1865, 1

</llo_original>
